<compile_context>
chip_gen: v7x
topology: tpu7x:2x2x1
jax: 0.10.0
libtpu: 0.0.40
codegen_flags: <defaults>
</compile_context>

<pallas_src>
import math

import jax
import jax.numpy as jnp
from jax.experimental import pallas as pl
from jax.experimental.pallas import tpu as pltpu

EPS = 1e-5        # GraphNorm eps
RATIO = 0.5       # TopKPooling ratio


# ---------------------------------------------------------------------------
# Weight slab layout (single DMA): every segment starts on an 8-row boundary.
# pk_i rows: 0 ChebConv bias, 1 GN weight, 2 GN bias, 3 GN mean_scale,
#            4 TopKPooling score weight (row 4 of pk3 is never read).
# ---------------------------------------------------------------------------
def _slab_layout(fin, nf):
    pad8 = lambda r: -(-r // 8) * 8
    offs, cur = {}, 0
    for name, rows in (("c1_w0", fin), ("c1_w1", fin),
                       ("c2_w0", nf), ("c2_w1", nf),
                       ("c3_w0", nf), ("c3_w1", nf),
                       ("pk1", 5), ("pk2", 5), ("pk3", 5)):
        offs[name] = cur
        cur += pad8(rows)
    return offs, cur


def pack_weights(params, fin, nf):
    offs, total = _slab_layout(fin, nf)
    slab = jnp.zeros((total, nf), jnp.float32)
    for name, off in offs.items():
        a = params[name].astype(jnp.float32)
        slab = slab.at[off:off + a.shape[0], :].set(a)
    return slab


# ---------------------------------------------------------------------------
# Fused kernel: block1 -> pool1 -> block2 -> pool2 -> block3 (all in VMEM/regs)
# ---------------------------------------------------------------------------
def _make_fused_kernel(fin, nf, n1, k1, k2):
    offs, _ = _slab_layout(fin, nf)

    def cheb_gn_relu(x_in, adj_in, w0, w1, prm, n):
        # ChebConv K=2, sym norm, lambda_max=2: L_hat = -D^-1/2 A D^-1/2
        deg = jnp.sum(adj_in, axis=1, keepdims=True)                    # (n, 1)
        dinv = jnp.where(deg > 0.0, jax.lax.rsqrt(jnp.maximum(deg, 1e-12)), 0.0)
        tx1 = -dinv * jnp.dot(adj_in, dinv * x_in,
                              preferred_element_type=jnp.float32)       # (n, Cin)
        h = (jnp.dot(x_in, w0, preferred_element_type=jnp.float32)
             + jnp.dot(tx1, w1, preferred_element_type=jnp.float32)
             + prm[0:1, :])                                             # (n, nf)
        # GraphNorm (single graph / batch == 0)
        inv_n = 1.0 / jnp.float32(n)
        mean = jnp.sum(h, axis=0, keepdims=True) * inv_n
        centered = h - mean * prm[3:4, :]
        var = jnp.sum(centered * centered, axis=0, keepdims=True) * inv_n
        normed = centered * jax.lax.rsqrt(var + EPS) * prm[1:2, :] + prm[2:3, :]
        return jnp.maximum(normed, 0.0)                                 # ReLU

    def topk_pool(x_feat, adj_in, wv, n, k):
        # TopKPooling: score = tanh(x.w / ||w||); keep top-k (desc, index
        # tie-break); x_next = x[perm] * score[perm]; adj_next = P A P^T.
        inv_nrm = jax.lax.rsqrt(jnp.sum(wv * wv))
        s_row = jnp.tanh(inv_nrm * jax.lax.dot_general(
            wv, x_feat, (((1,), (1,)), ((), ())),
            preferred_element_type=jnp.float32))                        # (1, n)
        s_col = jnp.tanh(inv_nrm * jax.lax.dot_general(
            x_feat, wv, (((1,), (1,)), ((), ())),
            preferred_element_type=jnp.float32))                        # (n, 1)
        # before[j, i] == 1 iff node j ranks strictly before node i
        jj = jax.lax.broadcasted_iota(jnp.int32, (n, n), 0)
        ii = jax.lax.broadcasted_iota(jnp.int32, (n, n), 1)
        before = (s_col > s_row) | ((s_col == s_row) & (jj < ii))
        rank = jnp.sum(before.astype(jnp.int32), axis=0, keepdims=True) # (1, n)
        rr = jax.lax.broadcasted_iota(jnp.int32, (k, n), 0)
        p = (rank == rr).astype(jnp.float32)                            # (k, n)
        # fold the score scaling into the permutation matrix
        x_next = jnp.dot(p * s_row, x_feat,
                         preferred_element_type=jnp.float32)            # (k, nf)
        pa = jnp.dot(p, adj_in, preferred_element_type=jnp.float32)     # (k, n)
        adj_next = jax.lax.dot_general(pa, p, (((1,), (1,)), ((), ())),
                                       preferred_element_type=jnp.float32)
        return x_next, adj_next

    def kernel(x_ref, adj_ref, w_ref, out_ref):
        adj1 = adj_ref[...]
        prm1 = w_ref[pl.ds(offs["pk1"], 8), :]
        prm2 = w_ref[pl.ds(offs["pk2"], 8), :]
        prm3 = w_ref[pl.ds(offs["pk3"], 8), :]

        # ---- Block 1 (specialized: no pooling prologue) --------------------
        x1 = cheb_gn_relu(x_ref[...], adj1,
                          w_ref[pl.ds(offs["c1_w0"], fin), :],
                          w_ref[pl.ds(offs["c1_w1"], fin), :],
                          prm1, n1)
        out_ref[pl.ds(0, n1), :] = x1

        # ---- TopKPooling 1 + Block 2 ---------------------------------------
        # TODO(synk): F.dropout(p=0.2) between pool and conv is identity (eval).
        x1p, adj2 = topk_pool(x1, adj1, prm1[4:5, :], n1, k1)
        x2 = cheb_gn_relu(x1p, adj2,
                          w_ref[pl.ds(offs["c2_w0"], nf), :],
                          w_ref[pl.ds(offs["c2_w1"], nf), :],
                          prm2, k1)
        out_ref[pl.ds(n1, k1), :] = x2

        # ---- TopKPooling 2 + Block 3 (no score / pooled-adj outputs) -------
        x2p, adj3 = topk_pool(x2, adj2, prm2[4:5, :], k1, k2)
        x3 = cheb_gn_relu(x2p, adj3,
                          w_ref[pl.ds(offs["c3_w0"], nf), :],
                          w_ref[pl.ds(offs["c3_w1"], nf), :],
                          prm3, k2)
        out_ref[pl.ds(n1 + k1, k2), :] = x3

    return kernel


# ---------------------------------------------------------------------------
# Forward (mirrors ChebNet.forward in eval mode): returns list of 3 feature maps
# ---------------------------------------------------------------------------
def chebnet_forward(x, adj, w_slab):
    n1, fin = x.shape
    nf = w_slab.shape[1]
    k1 = int(math.ceil(RATIO * n1))
    k2 = int(math.ceil(RATIO * k1))
    kernel = _make_fused_kernel(fin, nf, n1, k1, k2)
    vmem = pl.BlockSpec(memory_space=pltpu.MemorySpace.VMEM)
    slab = pl.pallas_call(
        kernel,
        out_shape=jax.ShapeDtypeStruct((n1 + k1 + k2, nf), jnp.float32),
        in_specs=[vmem, vmem, vmem],
        out_specs=vmem,
    )(x, adj, w_slab)
    # TODO(synk): self.linear / self.sigmoid are never used in forward -> omitted.
    return [slab[:n1], slab[n1:n1 + k1], slab[n1 + k1:]]


def init_params(key, num_features, nf):
    def glorot(k, fan_in, fan_out):
        lim = math.sqrt(6.0 / (fan_in + fan_out))
        return jax.random.uniform(k, (fan_in, fan_out), jnp.float32, -lim, lim)

    ks = jax.random.split(key, 8)
    p = {}
    # ChebConv weights (K=2): block 1: num_features -> nf, blocks 2/3: nf -> nf
    p["c1_w0"] = glorot(ks[0], num_features, nf)
    p["c1_w1"] = glorot(ks[1], num_features, nf)
    p["c2_w0"] = glorot(ks[2], nf, nf)
    p["c2_w1"] = glorot(ks[3], nf, nf)
    p["c3_w0"] = glorot(ks[4], nf, nf)
    p["c3_w1"] = glorot(ks[5], nf, nf)
    pool_w = {1: jax.random.uniform(ks[6], (nf,), jnp.float32, -1.0, 1.0),
              2: jax.random.uniform(ks[7], (nf,), jnp.float32, -1.0, 1.0),
              3: jnp.zeros((nf,), jnp.float32)}   # block 3 has no pool; unused
    for i in (1, 2, 3):
        p[f"pk{i}"] = jnp.stack([
            jnp.zeros((nf,), jnp.float32),   # ChebConv bias
            jnp.ones((nf,), jnp.float32),    # GraphNorm weight
            jnp.zeros((nf,), jnp.float32),   # GraphNorm bias
            jnp.ones((nf,), jnp.float32),    # GraphNorm mean_scale
            pool_w[i],                       # TopKPooling weight
        ], axis=0)
    return p


if __name__ == "__main__":
    num_nodes = 16      # self.num_nodes; also node count of the input graph
    num_features = 4
    nf = 16

    key = jax.random.PRNGKey(0)
    k_x, k_p = jax.random.split(key)

    # node features x: [N, F]
    x = jax.random.normal(k_x, (num_nodes, num_features), jnp.float32)

    # deterministic undirected ring graph -> edge_index [2, 2N], batch all zeros
    src = jnp.arange(num_nodes, dtype=jnp.int32)
    dst = (src + 1) % num_nodes
    edge_index = jnp.concatenate(
        [jnp.stack([src, dst]), jnp.stack([dst, src])], axis=1)
    batch = jnp.zeros((num_nodes,), jnp.int32)  # single graph

    # dense adjacency from edge_index
    adj = jnp.zeros((num_nodes, num_nodes), jnp.float32)
    adj = adj.at[edge_index[0], edge_index[1]].set(1.0)

    params = init_params(k_p, num_features, nf)
    w_slab = pack_weights(params, num_features, nf)   # single-DMA weight slab

    fwd = jax.jit(chebnet_forward)
    outs = fwd(x, adj, w_slab)
    for o in outs:
        jax.block_until_ready(o)

    assert outs[0].shape == (num_nodes, nf)
    assert outs[1].shape == (math.ceil(num_nodes * 0.5), nf)
    assert outs[2].shape == (math.ceil(math.ceil(num_nodes * 0.5) * 0.5), nf)
    print("KERNEL_OK")
</pallas_src>

<mosaic_0001>
module attributes {stable_mosaic.version = 11 : i64} {
  func.func @kernel(%arg0: memref<16x4xf32, #tpu.memory_space<vmem>>, %arg1: memref<16x16xf32, #tpu.memory_space<vmem>>, %arg2: memref<104x16xf32, #tpu.memory_space<vmem>>, %arg3: memref<28x16xf32, #tpu.memory_space<vmem>>) attributes {dimension_semantics = [], scalar_prefetch = 0 : i64, scratch_operands = 0 : i64, tpu.core_type = #tpu.core_type<tc>} {
    %c0 = arith.constant 0 : index
    %c0_0 = arith.constant 0 : index
    %0 = vector.load %arg1[%c0, %c0_0] : memref<16x16xf32, #tpu.memory_space<vmem>>, vector<16x16xf32>
    %c80 = arith.constant 80 : index
    %c0_1 = arith.constant 0 : index
    %1 = vector.load %arg2[%c80, %c0_1] : memref<104x16xf32, #tpu.memory_space<vmem>>, vector<8x16xf32>
    %c88 = arith.constant 88 : index
    %c0_2 = arith.constant 0 : index
    %2 = vector.load %arg2[%c88, %c0_2] : memref<104x16xf32, #tpu.memory_space<vmem>>, vector<8x16xf32>
    %c96 = arith.constant 96 : index
    %c0_3 = arith.constant 0 : index
    %3 = vector.load %arg2[%c96, %c0_3] : memref<104x16xf32, #tpu.memory_space<vmem>>, vector<8x16xf32>
    %c0_4 = arith.constant 0 : index
    %c0_5 = arith.constant 0 : index
    %4 = vector.load %arg0[%c0_4, %c0_5] : memref<16x4xf32, #tpu.memory_space<vmem>>, vector<16x4xf32>
    %c0_6 = arith.constant 0 : index
    %c0_7 = arith.constant 0 : index
    %5 = vector.load %arg2[%c0_6, %c0_7] : memref<104x16xf32, #tpu.memory_space<vmem>>, vector<4x16xf32>
    %c8 = arith.constant 8 : index
    %c0_8 = arith.constant 0 : index
    %6 = vector.load %arg2[%c8, %c0_8] : memref<104x16xf32, #tpu.memory_space<vmem>>, vector<4x16xf32>
    %cst = arith.constant dense<0.000000e+00> : vector<16xf32>
    %7 = vector.multi_reduction <add>, %0, %cst [1] : vector<16x16xf32> to vector<16xf32>
    %8 = vector.shape_cast %7 : vector<16xf32> to vector<16x1xf32>
    %cst_9 = arith.constant 0.000000e+00 : f32
    %9 = vector.broadcast %cst_9 : f32 to vector<16x1xf32>
    %10 = arith.cmpf ogt, %8, %9 : vector<16x1xf32>
    %cst_10 = arith.constant 9.99999996E-13 : f32
    %11 = vector.broadcast %cst_10 : f32 to vector<16x1xf32>
    %12 = arith.maximumf %8, %11 : vector<16x1xf32>
    %13 = math.rsqrt %12 : vector<16x1xf32>
    %cst_11 = arith.constant 0.000000e+00 : f32
    %14 = vector.broadcast %cst_11 : f32 to vector<16x1xf32>
    %15 = arith.select %10, %13, %14 : vector<16x1xi1>, vector<16x1xf32>
    %cst_12 = arith.constant 0.000000e+00 : f32
    %16 = vector.broadcast %cst_12 : f32 to vector<16x1xf32>
    %17 = arith.subf %16, %15 : vector<16x1xf32>
    %18 = vector.broadcast %15 : vector<16x1xf32> to vector<16x4xf32>
    %19 = arith.mulf %18, %4 : vector<16x4xf32>
    %cst_13 = arith.constant dense<0.000000e+00> : vector<16x4xf32>
    %20 = tpu.matmul %0, %19, %cst_13 {dimension_numbers = #tpu.dot_dimension_numbers<[1], [0], [0], [1], [0, 0, 1, 1], [], []>} : vector<16x16xf32>, vector<16x4xf32>, vector<16x4xf32> -> vector<16x4xf32>
    %21 = vector.broadcast %17 : vector<16x1xf32> to vector<16x4xf32>
    %22 = arith.mulf %21, %20 : vector<16x4xf32>
    %cst_14 = arith.constant dense<0.000000e+00> : vector<16x16xf32>
    %23 = tpu.matmul %4, %5, %cst_14 {dimension_numbers = #tpu.dot_dimension_numbers<[1], [0], [0], [1], [0, 0, 1, 1], [], []>} : vector<16x4xf32>, vector<4x16xf32>, vector<16x16xf32> -> vector<16x16xf32>
    %cst_15 = arith.constant dense<0.000000e+00> : vector<16x16xf32>
    %24 = tpu.matmul %22, %6, %cst_15 {dimension_numbers = #tpu.dot_dimension_numbers<[1], [0], [0], [1], [0, 0, 1, 1], [], []>} : vector<16x4xf32>, vector<4x16xf32>, vector<16x16xf32> -> vector<16x16xf32>
    %25 = arith.addf %23, %24 : vector<16x16xf32>
    %26 = vector.extract_strided_slice %1 {offsets = [0, 0], sizes = [1, 16], strides = [1, 1]} : vector<8x16xf32> to vector<1x16xf32>
    %27 = vector.broadcast %26 : vector<1x16xf32> to vector<16x16xf32>
    %28 = arith.addf %25, %27 : vector<16x16xf32>
    %cst_16 = arith.constant 1.000000e+00 : f32
    %cst_17 = arith.constant 1.600000e+01 : f32
    %29 = arith.divf %cst_16, %cst_17 : f32
    %cst_18 = arith.constant dense<0.000000e+00> : vector<16xf32>
    %30 = vector.multi_reduction <add>, %28, %cst_18 [0] : vector<16x16xf32> to vector<16xf32>
    %31 = vector.shape_cast %30 : vector<16xf32> to vector<1x16xf32>
    %32 = vector.broadcast %29 : f32 to vector<1x16xf32>
    %33 = arith.mulf %31, %32 : vector<1x16xf32>
    %34 = vector.extract_strided_slice %1 {offsets = [3, 0], sizes = [1, 16], strides = [1, 1]} : vector<8x16xf32> to vector<1x16xf32>
    %35 = arith.mulf %33, %34 : vector<1x16xf32>
    %36 = vector.broadcast %35 : vector<1x16xf32> to vector<16x16xf32>
    %37 = arith.subf %28, %36 : vector<16x16xf32>
    %38 = arith.mulf %37, %37 : vector<16x16xf32>
    %cst_19 = arith.constant dense<0.000000e+00> : vector<16xf32>
    %39 = vector.multi_reduction <add>, %38, %cst_19 [0] : vector<16x16xf32> to vector<16xf32>
    %40 = vector.shape_cast %39 : vector<16xf32> to vector<1x16xf32>
    %41 = vector.broadcast %29 : f32 to vector<1x16xf32>
    %42 = arith.mulf %40, %41 : vector<1x16xf32>
    %cst_20 = arith.constant 9.99999974E-6 : f32
    %43 = vector.broadcast %cst_20 : f32 to vector<1x16xf32>
    %44 = arith.addf %42, %43 : vector<1x16xf32>
    %45 = math.rsqrt %44 : vector<1x16xf32>
    %46 = vector.broadcast %45 : vector<1x16xf32> to vector<16x16xf32>
    %47 = arith.mulf %37, %46 : vector<16x16xf32>
    %48 = vector.extract_strided_slice %1 {offsets = [1, 0], sizes = [1, 16], strides = [1, 1]} : vector<8x16xf32> to vector<1x16xf32>
    %49 = vector.broadcast %48 : vector<1x16xf32> to vector<16x16xf32>
    %50 = arith.mulf %47, %49 : vector<16x16xf32>
    %51 = vector.extract_strided_slice %1 {offsets = [2, 0], sizes = [1, 16], strides = [1, 1]} : vector<8x16xf32> to vector<1x16xf32>
    %52 = vector.broadcast %51 : vector<1x16xf32> to vector<16x16xf32>
    %53 = arith.addf %50, %52 : vector<16x16xf32>
    %cst_21 = arith.constant 0.000000e+00 : f32
    %54 = vector.broadcast %cst_21 : f32 to vector<16x16xf32>
    %55 = arith.maximumf %53, %54 : vector<16x16xf32>
    %c0_22 = arith.constant 0 : index
    %c0_23 = arith.constant 0 : index
    %56 = vector.load %arg3[%c0_22, %c0_23] : memref<28x16xf32, #tpu.memory_space<vmem>>, vector<16x16xf32>
    tpu.vector_store %arg3[%c0_22, %c0_23], %55 {strides = array<i32>} : memref<28x16xf32, #tpu.memory_space<vmem>>, vector<16x16xf32>,
    %57 = vector.extract_strided_slice %1 {offsets = [4, 0], sizes = [1, 16], strides = [1, 1]} : vector<8x16xf32> to vector<1x16xf32>
    %58 = arith.mulf %57, %57 : vector<1x16xf32>
    %59 = vector.shape_cast %58 : vector<1x16xf32> to vector<1x1x16xf32>
    %cst_24 = arith.constant dense<0.000000e+00> : vector<1xf32>
    %60 = vector.multi_reduction <add>, %59, %cst_24 [1, 2] : vector<1x1x16xf32> to vector<1xf32>
    %61 = vector.shape_cast %60 : vector<1xf32> to vector<1x1x1xf32>
    %62 = vector.extract %61[0, 0, 0] : f32 from vector<1x1x1xf32>
    %63 = math.rsqrt %62 : f32
    %cst_25 = arith.constant dense<0.000000e+00> : vector<1x16xf32>
    %64 = tpu.matmul %57, %55, %cst_25 {dimension_numbers = #tpu.dot_dimension_numbers<[1], [1], [0], [0], [0, 0, 1, 0], [], []>} : vector<1x16xf32>, vector<16x16xf32>, vector<1x16xf32> -> vector<1x16xf32>
    %65 = vector.broadcast %63 : f32 to vector<1x16xf32>
    %66 = arith.mulf %65, %64 : vector<1x16xf32>
    %67 = math.tanh %66 : vector<1x16xf32>
    %cst_26 = arith.constant dense<0.000000e+00> : vector<16x1xf32>
    %68 = tpu.matmul %55, %57, %cst_26 {dimension_numbers = #tpu.dot_dimension_numbers<[1], [1], [0], [0], [0, 0, 1, 0], [], []>} : vector<16x16xf32>, vector<1x16xf32>, vector<16x1xf32> -> vector<16x1xf32>
    %69 = vector.broadcast %63 : f32 to vector<16x1xf32>
    %70 = arith.mulf %69, %68 : vector<16x1xf32>
    %71 = math.tanh %70 : vector<16x1xf32>
    %72 = tpu.iota {dimensions = array<i32: 0>} : vector<16x16xi32>
    %73 = tpu.iota {dimensions = array<i32: 1>} : vector<16x16xi32>
    %74 = vector.broadcast %71 : vector<16x1xf32> to vector<16x16xf32>
    %75 = vector.broadcast %67 : vector<1x16xf32> to vector<16x16xf32>
    %76 = arith.cmpf ogt, %74, %75 : vector<16x16xf32>
    %77 = vector.broadcast %71 : vector<16x1xf32> to vector<16x16xf32>
    %78 = vector.broadcast %67 : vector<1x16xf32> to vector<16x16xf32>
    %79 = arith.cmpf oeq, %77, %78 : vector<16x16xf32>
    %80 = arith.cmpi slt, %72, %73 : vector<16x16xi32>
    %81 = arith.andi %79, %80 : vector<16x16xi1>
    %82 = arith.ori %76, %81 : vector<16x16xi1>
    %83 = arith.extui %82 : vector<16x16xi1> to vector<16x16xi32>
    %cst_27 = arith.constant dense<0> : vector<16xi32>
    %84 = vector.multi_reduction <add>, %83, %cst_27 [0] : vector<16x16xi32> to vector<16xi32>
    %85 = vector.shape_cast %84 : vector<16xi32> to vector<1x16xi32>
    %86 = tpu.iota {dimensions = array<i32: 0>} : vector<8x16xi32>
    %87 = vector.broadcast %85 : vector<1x16xi32> to vector<8x16xi32>
    %88 = arith.cmpi eq, %87, %86 : vector<8x16xi32>
    %89 = arith.extui %88 : vector<8x16xi1> to vector<8x16xi32>
    %90 = arith.sitofp %89 : vector<8x16xi32> to vector<8x16xf32>
    %91 = vector.broadcast %67 : vector<1x16xf32> to vector<8x16xf32>
    %92 = arith.mulf %90, %91 : vector<8x16xf32>
    %cst_28 = arith.constant dense<0.000000e+00> : vector<8x16xf32>
    %93 = tpu.matmul %92, %55, %cst_28 {dimension_numbers = #tpu.dot_dimension_numbers<[1], [0], [0], [1], [0, 0, 1, 1], [], []>} : vector<8x16xf32>, vector<16x16xf32>, vector<8x16xf32> -> vector<8x16xf32>
    %cst_29 = arith.constant dense<0.000000e+00> : vector<8x16xf32>
    %94 = tpu.matmul %90, %0, %cst_29 {dimension_numbers = #tpu.dot_dimension_numbers<[1], [0], [0], [1], [0, 0, 1, 1], [], []>} : vector<8x16xf32>, vector<16x16xf32>, vector<8x16xf32> -> vector<8x16xf32>
    %cst_30 = arith.constant dense<0.000000e+00> : vector<8x8xf32>
    %95 = tpu.matmul %94, %90, %cst_30 {dimension_numbers = #tpu.dot_dimension_numbers<[1], [1], [0], [0], [0, 0, 1, 0], [], []>} : vector<8x16xf32>, vector<8x16xf32>, vector<8x8xf32> -> vector<8x8xf32>
    %c16 = arith.constant 16 : index
    %c0_31 = arith.constant 0 : index
    %96 = vector.load %arg2[%c16, %c0_31] : memref<104x16xf32, #tpu.memory_space<vmem>>, vector<16x16xf32>
    %c32 = arith.constant 32 : index
    %c0_32 = arith.constant 0 : index
    %97 = vector.load %arg2[%c32, %c0_32] : memref<104x16xf32, #tpu.memory_space<vmem>>, vector<16x16xf32>
    %cst_33 = arith.constant dense<0.000000e+00> : vector<8xf32>
    %98 = vector.multi_reduction <add>, %95, %cst_33 [1] : vector<8x8xf32> to vector<8xf32>
    %99 = vector.shape_cast %98 : vector<8xf32> to vector<8x1xf32>
    %cst_34 = arith.constant 0.000000e+00 : f32
    %100 = vector.broadcast %cst_34 : f32 to vector<8x1xf32>
    %101 = arith.cmpf ogt, %99, %100 : vector<8x1xf32>
    %cst_35 = arith.constant 9.99999996E-13 : f32
    %102 = vector.broadcast %cst_35 : f32 to vector<8x1xf32>
    %103 = arith.maximumf %99, %102 : vector<8x1xf32>
    %104 = math.rsqrt %103 : vector<8x1xf32>
    %cst_36 = arith.constant 0.000000e+00 : f32
    %105 = vector.broadcast %cst_36 : f32 to vector<8x1xf32>
    %106 = arith.select %101, %104, %105 : vector<8x1xi1>, vector<8x1xf32>
    %cst_37 = arith.constant 0.000000e+00 : f32
    %107 = vector.broadcast %cst_37 : f32 to vector<8x1xf32>
    %108 = arith.subf %107, %106 : vector<8x1xf32>
    %109 = vector.broadcast %106 : vector<8x1xf32> to vector<8x16xf32>
    %110 = arith.mulf %109, %93 : vector<8x16xf32>
    %cst_38 = arith.constant dense<0.000000e+00> : vector<8x16xf32>
    %111 = tpu.matmul %95, %110, %cst_38 {dimension_numbers = #tpu.dot_dimension_numbers<[1], [0], [0], [1], [0, 0, 1, 1], [], []>} : vector<8x8xf32>, vector<8x16xf32>, vector<8x16xf32> -> vector<8x16xf32>
    %112 = vector.broadcast %108 : vector<8x1xf32> to vector<8x16xf32>
    %113 = arith.mulf %112, %111 : vector<8x16xf32>
    %cst_39 = arith.constant dense<0.000000e+00> : vector<8x16xf32>
    %114 = tpu.matmul %93, %96, %cst_39 {dimension_numbers = #tpu.dot_dimension_numbers<[1], [0], [0], [1], [0, 0, 1, 1], [], []>} : vector<8x16xf32>, vector<16x16xf32>, vector<8x16xf32> -> vector<8x16xf32>
    %cst_40 = arith.constant dense<0.000000e+00> : vector<8x16xf32>
    %115 = tpu.matmul %113, %97, %cst_40 {dimension_numbers = #tpu.dot_dimension_numbers<[1], [0], [0], [1], [0, 0, 1, 1], [], []>} : vector<8x16xf32>, vector<16x16xf32>, vector<8x16xf32> -> vector<8x16xf32>
    %116 = arith.addf %114, %115 : vector<8x16xf32>
    %117 = vector.extract_strided_slice %2 {offsets = [0, 0], sizes = [1, 16], strides = [1, 1]} : vector<8x16xf32> to vector<1x16xf32>
    %118 = vector.broadcast %117 : vector<1x16xf32> to vector<8x16xf32>
    %119 = arith.addf %116, %118 : vector<8x16xf32>
    %cst_41 = arith.constant 1.000000e+00 : f32
    %cst_42 = arith.constant 8.000000e+00 : f32
    %120 = arith.divf %cst_41, %cst_42 : f32
    %cst_43 = arith.constant dense<0.000000e+00> : vector<16xf32>
    %121 = vector.multi_reduction <add>, %119, %cst_43 [0] : vector<8x16xf32> to vector<16xf32>
    %122 = vector.shape_cast %121 : vector<16xf32> to vector<1x16xf32>
    %123 = vector.broadcast %120 : f32 to vector<1x16xf32>
    %124 = arith.mulf %122, %123 : vector<1x16xf32>
    %125 = vector.extract_strided_slice %2 {offsets = [3, 0], sizes = [1, 16], strides = [1, 1]} : vector<8x16xf32> to vector<1x16xf32>
    %126 = arith.mulf %124, %125 : vector<1x16xf32>
    %127 = vector.broadcast %126 : vector<1x16xf32> to vector<8x16xf32>
    %128 = arith.subf %119, %127 : vector<8x16xf32>
    %129 = arith.mulf %128, %128 : vector<8x16xf32>
    %cst_44 = arith.constant dense<0.000000e+00> : vector<16xf32>
    %130 = vector.multi_reduction <add>, %129, %cst_44 [0] : vector<8x16xf32> to vector<16xf32>
    %131 = vector.shape_cast %130 : vector<16xf32> to vector<1x16xf32>
    %132 = vector.broadcast %120 : f32 to vector<1x16xf32>
    %133 = arith.mulf %131, %132 : vector<1x16xf32>
    %cst_45 = arith.constant 9.99999974E-6 : f32
    %134 = vector.broadcast %cst_45 : f32 to vector<1x16xf32>
    %135 = arith.addf %133, %134 : vector<1x16xf32>
    %136 = math.rsqrt %135 : vector<1x16xf32>
    %137 = vector.broadcast %136 : vector<1x16xf32> to vector<8x16xf32>
    %138 = arith.mulf %128, %137 : vector<8x16xf32>
    %139 = vector.extract_strided_slice %2 {offsets = [1, 0], sizes = [1, 16], strides = [1, 1]} : vector<8x16xf32> to vector<1x16xf32>
    %140 = vector.broadcast %139 : vector<1x16xf32> to vector<8x16xf32>
    %141 = arith.mulf %138, %140 : vector<8x16xf32>
    %142 = vector.extract_strided_slice %2 {offsets = [2, 0], sizes = [1, 16], strides = [1, 1]} : vector<8x16xf32> to vector<1x16xf32>
    %143 = vector.broadcast %142 : vector<1x16xf32> to vector<8x16xf32>
    %144 = arith.addf %141, %143 : vector<8x16xf32>
    %cst_46 = arith.constant 0.000000e+00 : f32
    %145 = vector.broadcast %cst_46 : f32 to vector<8x16xf32>
    %146 = arith.maximumf %144, %145 : vector<8x16xf32>
    %c16_47 = arith.constant 16 : index
    %c0_48 = arith.constant 0 : index
    %147 = vector.load %arg3[%c16_47, %c0_48] : memref<28x16xf32, #tpu.memory_space<vmem>>, vector<8x16xf32>
    tpu.vector_store %arg3[%c16_47, %c0_48], %146 {strides = array<i32>} : memref<28x16xf32, #tpu.memory_space<vmem>>, vector<8x16xf32>,
    %148 = vector.extract_strided_slice %2 {offsets = [4, 0], sizes = [1, 16], strides = [1, 1]} : vector<8x16xf32> to vector<1x16xf32>
    %149 = arith.mulf %148, %148 : vector<1x16xf32>
    %150 = vector.shape_cast %149 : vector<1x16xf32> to vector<1x1x16xf32>
    %cst_49 = arith.constant dense<0.000000e+00> : vector<1xf32>
    %151 = vector.multi_reduction <add>, %150, %cst_49 [1, 2] : vector<1x1x16xf32> to vector<1xf32>
    %152 = vector.shape_cast %151 : vector<1xf32> to vector<1x1x1xf32>
    %153 = vector.extract %152[0, 0, 0] : f32 from vector<1x1x1xf32>
    %154 = math.rsqrt %153 : f32
    %cst_50 = arith.constant dense<0.000000e+00> : vector<1x8xf32>
    %155 = tpu.matmul %148, %146, %cst_50 {dimension_numbers = #tpu.dot_dimension_numbers<[1], [1], [0], [0], [0, 0, 1, 0], [], []>} : vector<1x16xf32>, vector<8x16xf32>, vector<1x8xf32> -> vector<1x8xf32>
    %156 = vector.broadcast %154 : f32 to vector<1x8xf32>
    %157 = arith.mulf %156, %155 : vector<1x8xf32>
    %158 = math.tanh %157 : vector<1x8xf32>
    %cst_51 = arith.constant dense<0.000000e+00> : vector<8x1xf32>
    %159 = tpu.matmul %146, %148, %cst_51 {dimension_numbers = #tpu.dot_dimension_numbers<[1], [1], [0], [0], [0, 0, 1, 0], [], []>} : vector<8x16xf32>, vector<1x16xf32>, vector<8x1xf32> -> vector<8x1xf32>
    %160 = vector.broadcast %154 : f32 to vector<8x1xf32>
    %161 = arith.mulf %160, %159 : vector<8x1xf32>
    %162 = math.tanh %161 : vector<8x1xf32>
    %163 = tpu.iota {dimensions = array<i32: 0>} : vector<8x8xi32>
    %164 = tpu.iota {dimensions = array<i32: 1>} : vector<8x8xi32>
    %165 = vector.broadcast %162 : vector<8x1xf32> to vector<8x8xf32>
    %166 = vector.broadcast %158 : vector<1x8xf32> to vector<8x8xf32>
    %167 = arith.cmpf ogt, %165, %166 : vector<8x8xf32>
    %168 = vector.broadcast %162 : vector<8x1xf32> to vector<8x8xf32>
    %169 = vector.broadcast %158 : vector<1x8xf32> to vector<8x8xf32>
    %170 = arith.cmpf oeq, %168, %169 : vector<8x8xf32>
    %171 = arith.cmpi slt, %163, %164 : vector<8x8xi32>
    %172 = arith.andi %170, %171 : vector<8x8xi1>
    %173 = arith.ori %167, %172 : vector<8x8xi1>
    %174 = arith.extui %173 : vector<8x8xi1> to vector<8x8xi32>
    %cst_52 = arith.constant dense<0> : vector<8xi32>
    %175 = vector.multi_reduction <add>, %174, %cst_52 [0] : vector<8x8xi32> to vector<8xi32>
    %176 = vector.shape_cast %175 : vector<8xi32> to vector<1x8xi32>
    %177 = tpu.iota {dimensions = array<i32: 0>} : vector<4x8xi32>
    %178 = vector.broadcast %176 : vector<1x8xi32> to vector<4x8xi32>
    %179 = arith.cmpi eq, %178, %177 : vector<4x8xi32>
    %180 = arith.extui %179 : vector<4x8xi1> to vector<4x8xi32>
    %181 = arith.sitofp %180 : vector<4x8xi32> to vector<4x8xf32>
    %182 = vector.broadcast %158 : vector<1x8xf32> to vector<4x8xf32>
    %183 = arith.mulf %181, %182 : vector<4x8xf32>
    %cst_53 = arith.constant dense<0.000000e+00> : vector<4x16xf32>
    %184 = tpu.matmul %183, %146, %cst_53 {dimension_numbers = #tpu.dot_dimension_numbers<[1], [0], [0], [1], [0, 0, 1, 1], [], []>} : vector<4x8xf32>, vector<8x16xf32>, vector<4x16xf32> -> vector<4x16xf32>
    %cst_54 = arith.constant dense<0.000000e+00> : vector<4x8xf32>
    %185 = tpu.matmul %181, %95, %cst_54 {dimension_numbers = #tpu.dot_dimension_numbers<[1], [0], [0], [1], [0, 0, 1, 1], [], []>} : vector<4x8xf32>, vector<8x8xf32>, vector<4x8xf32> -> vector<4x8xf32>
    %cst_55 = arith.constant dense<0.000000e+00> : vector<4x4xf32>
    %186 = tpu.matmul %185, %181, %cst_55 {dimension_numbers = #tpu.dot_dimension_numbers<[1], [1], [0], [0], [0, 0, 1, 0], [], []>} : vector<4x8xf32>, vector<4x8xf32>, vector<4x4xf32> -> vector<4x4xf32>
    %c48 = arith.constant 48 : index
    %c0_56 = arith.constant 0 : index
    %187 = vector.load %arg2[%c48, %c0_56] : memref<104x16xf32, #tpu.memory_space<vmem>>, vector<16x16xf32>
    %c64 = arith.constant 64 : index
    %c0_57 = arith.constant 0 : index
    %188 = vector.load %arg2[%c64, %c0_57] : memref<104x16xf32, #tpu.memory_space<vmem>>, vector<16x16xf32>
    %cst_58 = arith.constant dense<0.000000e+00> : vector<4xf32>
    %189 = vector.multi_reduction <add>, %186, %cst_58 [1] : vector<4x4xf32> to vector<4xf32>
    %190 = vector.shape_cast %189 : vector<4xf32> to vector<4x1xf32>
    %cst_59 = arith.constant 0.000000e+00 : f32
    %191 = vector.broadcast %cst_59 : f32 to vector<4x1xf32>
    %192 = arith.cmpf ogt, %190, %191 : vector<4x1xf32>
    %cst_60 = arith.constant 9.99999996E-13 : f32
    %193 = vector.broadcast %cst_60 : f32 to vector<4x1xf32>
    %194 = arith.maximumf %190, %193 : vector<4x1xf32>
    %195 = math.rsqrt %194 : vector<4x1xf32>
    %cst_61 = arith.constant 0.000000e+00 : f32
    %196 = vector.broadcast %cst_61 : f32 to vector<4x1xf32>
    %197 = arith.select %192, %195, %196 : vector<4x1xi1>, vector<4x1xf32>
    %cst_62 = arith.constant 0.000000e+00 : f32
    %198 = vector.broadcast %cst_62 : f32 to vector<4x1xf32>
    %199 = arith.subf %198, %197 : vector<4x1xf32>
    %200 = vector.broadcast %197 : vector<4x1xf32> to vector<4x16xf32>
    %201 = arith.mulf %200, %184 : vector<4x16xf32>
    %cst_63 = arith.constant dense<0.000000e+00> : vector<4x16xf32>
    %202 = tpu.matmul %186, %201, %cst_63 {dimension_numbers = #tpu.dot_dimension_numbers<[1], [0], [0], [1], [0, 0, 1, 1], [], []>} : vector<4x4xf32>, vector<4x16xf32>, vector<4x16xf32> -> vector<4x16xf32>
    %203 = vector.broadcast %199 : vector<4x1xf32> to vector<4x16xf32>
    %204 = arith.mulf %203, %202 : vector<4x16xf32>
    %cst_64 = arith.constant dense<0.000000e+00> : vector<4x16xf32>
    %205 = tpu.matmul %184, %187, %cst_64 {dimension_numbers = #tpu.dot_dimension_numbers<[1], [0], [0], [1], [0, 0, 1, 1], [], []>} : vector<4x16xf32>, vector<16x16xf32>, vector<4x16xf32> -> vector<4x16xf32>
    %cst_65 = arith.constant dense<0.000000e+00> : vector<4x16xf32>
    %206 = tpu.matmul %204, %188, %cst_65 {dimension_numbers = #tpu.dot_dimension_numbers<[1], [0], [0], [1], [0, 0, 1, 1], [], []>} : vector<4x16xf32>, vector<16x16xf32>, vector<4x16xf32> -> vector<4x16xf32>
    %207 = arith.addf %205, %206 : vector<4x16xf32>
    %208 = vector.extract_strided_slice %3 {offsets = [0, 0], sizes = [1, 16], strides = [1, 1]} : vector<8x16xf32> to vector<1x16xf32>
    %209 = vector.broadcast %208 : vector<1x16xf32> to vector<4x16xf32>
    %210 = arith.addf %207, %209 : vector<4x16xf32>
    %cst_66 = arith.constant 1.000000e+00 : f32
    %cst_67 = arith.constant 4.000000e+00 : f32
    %211 = arith.divf %cst_66, %cst_67 : f32
    %cst_68 = arith.constant dense<0.000000e+00> : vector<16xf32>
    %212 = vector.multi_reduction <add>, %210, %cst_68 [0] : vector<4x16xf32> to vector<16xf32>
    %213 = vector.shape_cast %212 : vector<16xf32> to vector<1x16xf32>
    %214 = vector.broadcast %211 : f32 to vector<1x16xf32>
    %215 = arith.mulf %213, %214 : vector<1x16xf32>
    %216 = vector.extract_strided_slice %3 {offsets = [3, 0], sizes = [1, 16], strides = [1, 1]} : vector<8x16xf32> to vector<1x16xf32>
    %217 = arith.mulf %215, %216 : vector<1x16xf32>
    %218 = vector.broadcast %217 : vector<1x16xf32> to vector<4x16xf32>
    %219 = arith.subf %210, %218 : vector<4x16xf32>
    %220 = arith.mulf %219, %219 : vector<4x16xf32>
    %cst_69 = arith.constant dense<0.000000e+00> : vector<16xf32>
    %221 = vector.multi_reduction <add>, %220, %cst_69 [0] : vector<4x16xf32> to vector<16xf32>
    %222 = vector.shape_cast %221 : vector<16xf32> to vector<1x16xf32>
    %223 = vector.broadcast %211 : f32 to vector<1x16xf32>
    %224 = arith.mulf %222, %223 : vector<1x16xf32>
    %cst_70 = arith.constant 9.99999974E-6 : f32
    %225 = vector.broadcast %cst_70 : f32 to vector<1x16xf32>
    %226 = arith.addf %224, %225 : vector<1x16xf32>
    %227 = math.rsqrt %226 : vector<1x16xf32>
    %228 = vector.broadcast %227 : vector<1x16xf32> to vector<4x16xf32>
    %229 = arith.mulf %219, %228 : vector<4x16xf32>
    %230 = vector.extract_strided_slice %3 {offsets = [1, 0], sizes = [1, 16], strides = [1, 1]} : vector<8x16xf32> to vector<1x16xf32>
    %231 = vector.broadcast %230 : vector<1x16xf32> to vector<4x16xf32>
    %232 = arith.mulf %229, %231 : vector<4x16xf32>
    %233 = vector.extract_strided_slice %3 {offsets = [2, 0], sizes = [1, 16], strides = [1, 1]} : vector<8x16xf32> to vector<1x16xf32>
    %234 = vector.broadcast %233 : vector<1x16xf32> to vector<4x16xf32>
    %235 = arith.addf %232, %234 : vector<4x16xf32>
    %cst_71 = arith.constant 0.000000e+00 : f32
    %236 = vector.broadcast %cst_71 : f32 to vector<4x16xf32>
    %237 = arith.maximumf %235, %236 : vector<4x16xf32>
    %c24 = arith.constant 24 : index
    %c0_72 = arith.constant 0 : index
    %238 = vector.load %arg3[%c24, %c0_72] : memref<28x16xf32, #tpu.memory_space<vmem>>, vector<4x16xf32>
    tpu.vector_store %arg3[%c24, %c0_72], %237 {strides = array<i32>} : memref<28x16xf32, #tpu.memory_space<vmem>>, vector<4x16xf32>,
    return
  }
}

</mosaic_0001>

<llo_original>
// kernel: chebnet_forward.1
$region0: #{chebnet_forward.1}
  #allocation0 [shape = 'u32[]', space=smem, size = 0x4, offset = 0x4, fixed_abs, tag = 'smem constant byte address 0x4 - core index']
  #allocation1 [shape = 'u32[144,128]{1,0:T(1,128)}', space=vmem, size = 0x12000, scoped, tag = 'internal scratch']
  %s0 = inlined_call_operand.vmem [shape: f32[16,4], index: 0, kind: input, shape index: {}]
  %s1 = inlined_call_operand.vmem [shape: f32[16,16], index: 1, kind: input, shape index: {}]
  %s2 = inlined_call_operand.vmem [shape: f32[104,16], index: 2, kind: input, shape index: {}]
  %s3 = inlined_call_operand.vmem [shape: f32[28,16], index: 3, kind: output, shape index: {}]
  %s4 = sld [smem:[#allocation0]]
  $region22: #{chebnet_forward.1} parent=0
    _
  %s6 = ssub.s32 1, %s4
  %s7 = scalar_select 0, %s6, %s4
  // Predicated region
  $region2: #{chebnet_forward.1} parent=0 // pred_check
    _
  $region3: #{chebnet_forward.1} parent=0 // pred_check_branch
    %9 = sbr.rel (0) target = $region5
  $region4: #{chebnet_forward.1} parent=0 // pred_region
    _
  $region5: #{chebnet_forward.1} parent=0 // pred_fallthru
    _
  // Predicated region
  $region6: #{chebnet_forward.1} parent=0 // pred_check
    _
  $region7: #{chebnet_forward.1} parent=0 // pred_check_branch
    %11 = sbr.rel (0) target = $region9
  $region8: #{chebnet_forward.1} parent=0 // pred_region
    _
  $region9: #{chebnet_forward.1} parent=0 // pred_fallthru
    _
  // Predicated region
  $region10: #{chebnet_forward.1} parent=0 // pred_check
    _
  $region11: #{chebnet_forward.1} parent=0 // pred_check_branch
    %13 = sbr.rel (0) target = $region13
  $region12: #{chebnet_forward.1} parent=0 // pred_region
    _
  $region13: #{chebnet_forward.1} parent=0 // pred_fallthru
    _
  %v14 = vld [vmem:[%s1] sm:$0xff]
  %v15 = vld [vmem:[%s1 + $0x8] sm:$0xff]
  %v16 = vld [vmem:[%s2 + $0x50] sm:$0xff]
  %v17 = vld [vmem:[%s2 + $0x58] sm:$0xff]
  %v18 = vld [vmem:[%s2 + $0x60] sm:$0xff]
  %v19 = vld [vmem:[%s0] sm:$0xff]
  %v20 = vld [vmem:[%s0 + $0x8] sm:$0xff]
  %v21 = vld [vmem:[%s2] sm:$0xf]
  %v22 = vld [vmem:[%s2 + $0x8] sm:$0xf]
  %vm23 = vcmask 130048
  %v24 = vsel %vm23, %v14, 0.0
  %25 = vadd.xlane.f32.xlu0 %v24
  %v26 = vpop.xlane.xlu0 %25
  %v27 = vsel %vm23, %v15, 0.0
  %28 = vadd.xlane.f32.xlu0 %v27
  %v29 = vpop.xlane.xlu0 %28
  %vm30 = vcmp.gt.f32.partialorder %v26, 0.0
  %vm31 = vcmp.gt.f32.partialorder %v29, 0.0
  %v32 = vmax.f32 %v26, 1e-12
  %v33 = vmax.f32 %v29, 1e-12
  %v34 = vrsqrt.pop %v32
  %v35 = vrsqrt.pop %v33
  %v36 = vsel %vm30, %v34, 0.0
  %v37 = vsel %vm31, %v35, 0.0
  %v38 = vsub.f32 0.0, %v36
  %v39 = vsub.f32 0.0, %v37
  %v40 = vmul.f32 %v36, %v19
  %v41 = vmul.f32 %v37, %v20
  %v43 = vsel %vm23, %v14, 0
  %v46 = vsel %vm23, %v15, 0
  %48 = vmatprep.subr.mxu0 0.0
  %49 = vmatpush1.msra.mxu0 %v40
  %50 = vmatprep.subr.mxu0 0.0
  %51 = vmatpush1.msra.mxu0 %v41
  %52 = vmatprep.subr.mxu0 0.0
  %53 = vmatpush1.msra.mxu0 0.0
  %54 = vmatprep.subr.mxu0 0.0
  %55 = vmatpush1.msra.mxu0 0.0
  %56 = vmatprep.subr.mxu0 0.0
  %57 = vmatpush1.msra.mxu0 0.0
  %58 = vmatprep.subr.mxu0 0.0
  %59 = vmatpush1.msra.mxu0 0.0
  %60 = vmatprep.subr.mxu0 0.0
  %61 = vmatpush1.msra.mxu0 0.0
  %62 = vmatprep.subr.mxu0 0.0
  %63 = vmatpush1.msra.mxu0 0.0
  %64 = vmatprep.subr.mxu0 0.0
  %65 = vmatpush1.msra.mxu0 0.0
  %66 = vmatprep.subr.mxu0 0.0
  %67 = vmatpush1.msra.mxu0 0.0
  %68 = vmatprep.subr.mxu0 0.0
  %69 = vmatpush1.msra.mxu0 0.0
  %70 = vmatprep.subr.mxu0 0.0
  %71 = vmatpush1.msra.mxu0 0.0
  %72 = vmatprep.subr.mxu0 0.0
  %73 = vmatpush1.msra.mxu0 0.0
  %74 = vmatprep.subr.mxu0 0.0
  %75 = vmatpush1.msra.mxu0 0.0
  %76 = vmatprep.subr.mxu0 0.0
  %77 = vmatpush1.msra.mxu0 0.0
  %78 = vmatprep.subr.mxu0 0.0
  %79 = vmatpush1.msra.mxu0 0.0
  %80 = vmatprep.subr.mxu0 0.0
  %81 = vmatpush1.msra.mxu0 0.0
  %82 = vmatprep.subr.mxu0 0.0
  %83 = vmatpush1.msra.mxu0 0.0
  %84 = vmatprep.subr.mxu0 0.0
  %85 = vmatpush1.msra.mxu0 0.0
  %86 = vmatprep.subr.mxu0 0.0
  %87 = vmatpush1.msra.mxu0 0.0
  %88 = vmatprep.subr.mxu0 0.0
  %89 = vmatpush1.msra.mxu0 0.0
  %90 = vmatprep.subr.mxu0 0.0
  %91 = vmatpush1.msra.mxu0 0.0
  %92 = vmatprep.subr.mxu0 0.0
  %93 = vmatpush1.msra.mxu0 0.0
  %94 = vmatprep.subr.mxu0 0.0
  %95 = vmatpush1.msra.mxu0 0.0
  %96 = vmatprep.subr.mxu0 0.0
  %97 = vmatpush1.msra.mxu0 0.0
  %98 = vmatprep.subr.mxu0 0.0
  %99 = vmatpush1.msra.mxu0 0.0
  %100 = vmatprep.subr.mxu0 0.0
  %101 = vmatpush1.msra.mxu0 0.0
  %102 = vmatprep.subr.mxu0 0.0
  %103 = vmatpush1.msra.mxu0 0.0
  %104 = vmatprep.subr.mxu0 0.0
  %105 = vmatpush1.msra.mxu0 0.0
  %106 = vmatprep.subr.mxu0 0.0
  %107 = vmatpush1.msra.mxu0 0.0
  %108 = vmatprep.subr.mxu0 0.0
  %109 = vmatpush1.msra.mxu0 0.0
  %110 = vmatprep.subr.mxu0 0.0
  %111 = vmatpush1.msra.mxu0 0.0
  %112 = vmatprep.mubr.f32.mxu0 0.0
  %113 = vmatmul.mubr.f32.gmra.mrb[0].mxu0 %v43
  %v114 = vpop.f32.mrb[0].mxu0
  %v115 = vadd.f32 0.0, %v114
  %v116 = vpop.f32.mrb[0].mxu0
  %117 = vmatprep.mubr.f32.mxu0 0.0
  %118 = vmatmul.mubr.f32.gmra.mrb[0].mxu0 %v46
  %v119 = vpop.f32.mrb[0].mxu0
  %v120 = vadd.f32 0.0, %v119
  %v121 = vpop.f32.mrb[0].mxu0
  %122 = vdwg.mxu0
  %v123 = vmul.f32 %v38, %v115
  %v124 = vmul.f32 %v39, %v120
  %vm125 = vcmask 31744
  %v127 = vsel %vm125, %v123, 0
  %v130 = vsel %vm125, %v124, 0
  %vm132 = vcmask 1043456
  %v134 = vsel %vm132, %v22, 0
  %136 = vmatprep.subr.mxu0 0.0
  %137 = vmatpush1.msra.mxu0 %v134
  %138 = vmatprep.subr.mxu0 0.0
  %139 = vmatpush1.msra.mxu0 0.0
  %140 = vmatprep.subr.mxu0 0.0
  %141 = vmatpush1.msra.mxu0 0.0
  %142 = vmatprep.subr.mxu0 0.0
  %143 = vmatpush1.msra.mxu0 0.0
  %144 = vmatprep.subr.mxu0 0.0
  %145 = vmatpush1.msra.mxu0 0.0
  %146 = vmatprep.subr.mxu0 0.0
  %147 = vmatpush1.msra.mxu0 0.0
  %148 = vmatprep.subr.mxu0 0.0
  %149 = vmatpush1.msra.mxu0 0.0
  %150 = vmatprep.subr.mxu0 0.0
  %151 = vmatpush1.msra.mxu0 0.0
  %152 = vmatprep.subr.mxu0 0.0
  %153 = vmatpush1.msra.mxu0 0.0
  %154 = vmatprep.subr.mxu0 0.0
  %155 = vmatpush1.msra.mxu0 0.0
  %156 = vmatprep.subr.mxu0 0.0
  %157 = vmatpush1.msra.mxu0 0.0
  %158 = vmatprep.subr.mxu0 0.0
  %159 = vmatpush1.msra.mxu0 0.0
  %160 = vmatprep.subr.mxu0 0.0
  %161 = vmatpush1.msra.mxu0 0.0
  %162 = vmatprep.subr.mxu0 0.0
  %163 = vmatpush1.msra.mxu0 0.0
  %164 = vmatprep.subr.mxu0 0.0
  %165 = vmatpush1.msra.mxu0 0.0
  %166 = vmatprep.subr.mxu0 0.0
  %167 = vmatpush1.msra.mxu0 0.0
  %168 = vmatprep.subr.mxu0 0.0
  %169 = vmatpush1.msra.mxu0 0.0
  %170 = vmatprep.subr.mxu0 0.0
  %171 = vmatpush1.msra.mxu0 0.0
  %172 = vmatprep.subr.mxu0 0.0
  %173 = vmatpush1.msra.mxu0 0.0
  %174 = vmatprep.subr.mxu0 0.0
  %175 = vmatpush1.msra.mxu0 0.0
  %176 = vmatprep.subr.mxu0 0.0
  %177 = vmatpush1.msra.mxu0 0.0
  %178 = vmatprep.subr.mxu0 0.0
  %179 = vmatpush1.msra.mxu0 0.0
  %180 = vmatprep.subr.mxu0 0.0
  %181 = vmatpush1.msra.mxu0 0.0
  %182 = vmatprep.subr.mxu0 0.0
  %183 = vmatpush1.msra.mxu0 0.0
  %184 = vmatprep.subr.mxu0 0.0
  %185 = vmatpush1.msra.mxu0 0.0
  %186 = vmatprep.subr.mxu0 0.0
  %187 = vmatpush1.msra.mxu0 0.0
  %188 = vmatprep.subr.mxu0 0.0
  %189 = vmatpush1.msra.mxu0 0.0
  %190 = vmatprep.subr.mxu0 0.0
  %191 = vmatpush1.msra.mxu0 0.0
  %192 = vmatprep.subr.mxu0 0.0
  %193 = vmatpush1.msra.mxu0 0.0
  %194 = vmatprep.subr.mxu0 0.0
  %195 = vmatpush1.msra.mxu0 0.0
  %196 = vmatprep.subr.mxu0 0.0
  %197 = vmatpush1.msra.mxu0 0.0
  %198 = vmatprep.subr.mxu0 0.0
  %199 = vmatpush1.msra.mxu0 0.0
  %200 = vmatprep.mubr.f32.mxu0 0.0
  %201 = vmatmul.mubr.f32.gmra.mrb[0].mxu0 %v127
  %v202 = vpop.f32.mrb[0].mxu0
  %v203 = vadd.f32 0.0, %v202
  %v204 = vpop.f32.mrb[0].mxu0
  %205 = vmatprep.mubr.f32.mxu0 0.0
  %206 = vmatmul.mubr.f32.gmra.mrb[0].mxu0 %v130
  %v207 = vpop.f32.mrb[0].mxu0
  %v208 = vadd.f32 0.0, %v207
  %v209 = vpop.f32.mrb[0].mxu0
  %210 = vdwg.mxu0
  %v212 = vsel %vm125, %v19, 0
  %v215 = vsel %vm125, %v20, 0
  %v218 = vsel %vm132, %v21, 0
  %220 = vmatprep.subr.mxu0 0.0
  %221 = vmatpush1.msra.mxu0 %v218
  %222 = vmatprep.subr.mxu0 0.0
  %223 = vmatpush1.msra.mxu0 0.0
  %224 = vmatprep.subr.mxu0 0.0
  %225 = vmatpush1.msra.mxu0 0.0
  %226 = vmatprep.subr.mxu0 0.0
  %227 = vmatpush1.msra.mxu0 0.0
  %228 = vmatprep.subr.mxu0 0.0
  %229 = vmatpush1.msra.mxu0 0.0
  %230 = vmatprep.subr.mxu0 0.0
  %231 = vmatpush1.msra.mxu0 0.0
  %232 = vmatprep.subr.mxu0 0.0
  %233 = vmatpush1.msra.mxu0 0.0
  %234 = vmatprep.subr.mxu0 0.0
  %235 = vmatpush1.msra.mxu0 0.0
  %236 = vmatprep.subr.mxu0 0.0
  %237 = vmatpush1.msra.mxu0 0.0
  %238 = vmatprep.subr.mxu0 0.0
  %239 = vmatpush1.msra.mxu0 0.0
  %240 = vmatprep.subr.mxu0 0.0
  %241 = vmatpush1.msra.mxu0 0.0
  %242 = vmatprep.subr.mxu0 0.0
  %243 = vmatpush1.msra.mxu0 0.0
  %244 = vmatprep.subr.mxu0 0.0
  %245 = vmatpush1.msra.mxu0 0.0
  %246 = vmatprep.subr.mxu0 0.0
  %247 = vmatpush1.msra.mxu0 0.0
  %248 = vmatprep.subr.mxu0 0.0
  %249 = vmatpush1.msra.mxu0 0.0
  %250 = vmatprep.subr.mxu0 0.0
  %251 = vmatpush1.msra.mxu0 0.0
  %252 = vmatprep.subr.mxu0 0.0
  %253 = vmatpush1.msra.mxu0 0.0
  %254 = vmatprep.subr.mxu0 0.0
  %255 = vmatpush1.msra.mxu0 0.0
  %256 = vmatprep.subr.mxu0 0.0
  %257 = vmatpush1.msra.mxu0 0.0
  %258 = vmatprep.subr.mxu0 0.0
  %259 = vmatpush1.msra.mxu0 0.0
  %260 = vmatprep.subr.mxu0 0.0
  %261 = vmatpush1.msra.mxu0 0.0
  %262 = vmatprep.subr.mxu0 0.0
  %263 = vmatpush1.msra.mxu0 0.0
  %264 = vmatprep.subr.mxu0 0.0
  %265 = vmatpush1.msra.mxu0 0.0
  %266 = vmatprep.subr.mxu0 0.0
  %267 = vmatpush1.msra.mxu0 0.0
  %268 = vmatprep.subr.mxu0 0.0
  %269 = vmatpush1.msra.mxu0 0.0
  %270 = vmatprep.subr.mxu0 0.0
  %271 = vmatpush1.msra.mxu0 0.0
  %272 = vmatprep.subr.mxu0 0.0
  %273 = vmatpush1.msra.mxu0 0.0
  %274 = vmatprep.subr.mxu0 0.0
  %275 = vmatpush1.msra.mxu0 0.0
  %276 = vmatprep.subr.mxu0 0.0
  %277 = vmatpush1.msra.mxu0 0.0
  %278 = vmatprep.subr.mxu0 0.0
  %279 = vmatpush1.msra.mxu0 0.0
  %280 = vmatprep.subr.mxu0 0.0
  %281 = vmatpush1.msra.mxu0 0.0
  %282 = vmatprep.subr.mxu0 0.0
  %283 = vmatpush1.msra.mxu0 0.0
  %284 = vmatprep.mubr.f32.mxu0 0.0
  %285 = vmatmul.mubr.f32.gmra.mrb[0].mxu0 %v212
  %v286 = vpop.f32.mrb[0].mxu0
  %v287 = vadd.f32 %v203, %v286
  %v288 = vpop.f32.mrb[0].mxu0
  %289 = vmatprep.mubr.f32.mxu0 0.0
  %290 = vmatmul.mubr.f32.gmra.mrb[0].mxu0 %v215
  %v291 = vpop.f32.mrb[0].mxu0
  %v292 = vadd.f32 %v208, %v291
  %v293 = vpop.f32.mrb[0].mxu0
  %294 = vdwg.mxu0
  %v295 = vlaneseq
  %v296 = vshrl.u32 %v295, 7
  %v297 = vsub.s32 0, %v296
  %v298 = vrot.slane %v16, %v297
  %v299 = vadd.f32 %v287, %v298
  %v300 = vadd.f32 %v292, %v298
  %v301 = vsel %vm23, %v299, 0.0
  %v302 = vsel %vm23, %v300, 0.0
  %v303 = vadd.f32 %v301, %v302
  %v304 = vrot.slane %v303, 4
  %v305 = vadd.f32 %v303, %v304
  %v306 = vrot.slane %v305, 2
  %v307 = vadd.f32 %v305, %v306
  %v308 = vrot.slane %v307, 1
  %v309 = vadd.f32 %v307, %v308
  %v310 = vmul.f32 %v309, 0.0625
  %v311 = vmul.f32 %v310, %v16
  %v312 = vlaneseq
  %v313 = vshrl.u32 %v312, 7
  %v314 = vsub.s32 3, %v313
  %v315 = vrot.slane %v311, %v314
  %v316 = vsub.f32 %v299, %v315
  %v317 = vsub.f32 %v300, %v315
  %v318 = vmul.f32 %v316, %v316
  %v319 = vmul.f32 %v317, %v317
  %v320 = vsel %vm23, %v318, 0.0
  %v321 = vsel %vm23, %v319, 0.0
  %v322 = vadd.f32 %v320, %v321
  %v323 = vrot.slane %v322, 4
  %v324 = vadd.f32 %v322, %v323
  %v325 = vrot.slane %v324, 2
  %v326 = vadd.f32 %v324, %v325
  %v327 = vrot.slane %v326, 1
  %v328 = vadd.f32 %v326, %v327
  %v329 = vmul.f32 %v328, 0.0625
  %v330 = vadd.f32 %v329, 1e-05
  %v331 = vrsqrt.pop %v330
  %v332 = vmul.f32 %v316, %v331
  %v333 = vmul.f32 %v317, %v331
  %v334 = vlaneseq
  %v335 = vshrl.u32 %v334, 7
  %v336 = vsub.s32 1, %v335
  %v337 = vrot.slane %v16, %v336
  %v338 = vmul.f32 %v332, %v337
  %v339 = vmul.f32 %v333, %v337
  %v340 = vlaneseq
  %v341 = vshrl.u32 %v340, 7
  %v342 = vsub.s32 2, %v341
  %v343 = vrot.slane %v16, %v342
  %v344 = vadd.f32 %v338, %v343
  %v345 = vadd.f32 %v339, %v343
  %v346 = vmax.f32 %v344, 0.0
  %v347 = vmax.f32 %v345, 0.0
  %348 = vst.msk [vmem:[%s3] sm:$0xff] %vm23, %v346
  %349 = vst.msk [vmem:[%s3 + $0x8] sm:$0xff] %vm23, %v347
  %v350 = vmul.f32 %v16, %v16
  %v352 = vrot.slane %v350, 4
  %vm354 = vcmask 122880
  %v355 = vsel %vm354, %v352, 0.0
  %356 = vadd.xlane.f32.xlu0 %v355
  %v357 = vpop.xlane.xlu0 %356
  %v358 = vrot.slane %v357, 4
  %v359 = vadd.f32 %v357, %v358
  %v360 = vrot.slane %v359, 2
  %v361 = vadd.f32 %v359, %v360
  %v362 = vrot.slane %v361, 1
  %v363 = vadd.f32 %v361, %v362
  %s364 = vtos %v363
  %v365 = vstv %s364
  %v366 = vrsqrt.pop %v365
  %s367 = vtos %v366
  %v369 = vrot.slane %v16, 4
  %v370 = vsel %vm23, %v369, 0
  %v373 = vsel %vm23, %v346, 0
  %v376 = vsel %vm23, %v347, 0
  %378 = vmatprep.subr.mxu0 0.0
  %379 = vmatpush1.xpose.msra.mxu0 %v373
  %380 = vmatprep.subr.mxu0 0.0
  %381 = vmatpush1.xpose.msra.mxu0 %v376
  %382 = vmatprep.subr.mxu0 0.0
  %383 = vmatpush1.xpose.msra.mxu0 0.0
  %384 = vmatprep.subr.mxu0 0.0
  %385 = vmatpush1.xpose.msra.mxu0 0.0
  %386 = vmatprep.subr.mxu0 0.0
  %387 = vmatpush1.xpose.msra.mxu0 0.0
  %388 = vmatprep.subr.mxu0 0.0
  %389 = vmatpush1.xpose.msra.mxu0 0.0
  %390 = vmatprep.subr.mxu0 0.0
  %391 = vmatpush1.xpose.msra.mxu0 0.0
  %392 = vmatprep.subr.mxu0 0.0
  %393 = vmatpush1.xpose.msra.mxu0 0.0
  %394 = vmatprep.subr.mxu0 0.0
  %395 = vmatpush1.xpose.msra.mxu0 0.0
  %396 = vmatprep.subr.mxu0 0.0
  %397 = vmatpush1.xpose.msra.mxu0 0.0
  %398 = vmatprep.subr.mxu0 0.0
  %399 = vmatpush1.xpose.msra.mxu0 0.0
  %400 = vmatprep.subr.mxu0 0.0
  %401 = vmatpush1.xpose.msra.mxu0 0.0
  %402 = vmatprep.subr.mxu0 0.0
  %403 = vmatpush1.xpose.msra.mxu0 0.0
  %404 = vmatprep.subr.mxu0 0.0
  %405 = vmatpush1.xpose.msra.mxu0 0.0
  %406 = vmatprep.subr.mxu0 0.0
  %407 = vmatpush1.xpose.msra.mxu0 0.0
  %408 = vmatprep.subr.mxu0 0.0
  %409 = vmatpush1.xpose.msra.mxu0 0.0
  %410 = vmatprep.subr.mxu0 0.0
  %411 = vmatpush1.xpose.msra.mxu0 0.0
  %412 = vmatprep.subr.mxu0 0.0
  %413 = vmatpush1.xpose.msra.mxu0 0.0
  %414 = vmatprep.subr.mxu0 0.0
  %415 = vmatpush1.xpose.msra.mxu0 0.0
  %416 = vmatprep.subr.mxu0 0.0
  %417 = vmatpush1.xpose.msra.mxu0 0.0
  %418 = vmatprep.subr.mxu0 0.0
  %419 = vmatpush1.xpose.msra.mxu0 0.0
  %420 = vmatprep.subr.mxu0 0.0
  %421 = vmatpush1.xpose.msra.mxu0 0.0
  %422 = vmatprep.subr.mxu0 0.0
  %423 = vmatpush1.xpose.msra.mxu0 0.0
  %424 = vmatprep.subr.mxu0 0.0
  %425 = vmatpush1.xpose.msra.mxu0 0.0
  %426 = vmatprep.subr.mxu0 0.0
  %427 = vmatpush1.xpose.msra.mxu0 0.0
  %428 = vmatprep.subr.mxu0 0.0
  %429 = vmatpush1.xpose.msra.mxu0 0.0
  %430 = vmatprep.subr.mxu0 0.0
  %431 = vmatpush1.xpose.msra.mxu0 0.0
  %432 = vmatprep.subr.mxu0 0.0
  %433 = vmatpush1.xpose.msra.mxu0 0.0
  %434 = vmatprep.subr.mxu0 0.0
  %435 = vmatpush1.xpose.msra.mxu0 0.0
  %436 = vmatprep.subr.mxu0 0.0
  %437 = vmatpush1.xpose.msra.mxu0 0.0
  %438 = vmatprep.subr.mxu0 0.0
  %439 = vmatpush1.xpose.msra.mxu0 0.0
  %440 = vmatprep.subr.mxu0 0.0
  %441 = vmatpush1.xpose.msra.mxu0 0.0
  %442 = vmatprep.mubr.f32.mxu0 0.0
  %443 = vmatmul.mubr.f32.gmra.mrb[0].mxu0 %v370
  %v444 = vpop.f32.mrb[0].mxu0
  %v445 = vadd.f32 0.0, %v444
  %v446 = vpop.f32.mrb[0].mxu0
  %447 = vdwg.mxu0
  %v448 = vstv %s367
  %v449 = vmul.f32 %v448, %v445
  %v450 = vtanh.pop %v449
  %v451 = vlaneseq
  %v452 = vshrl.u32 %v451, 7
  %v453 = vsub.s32 4, %v452
  %v454 = vrot.slane %v16, %v453
  %v455 = vmul.f32 %v346, %v454
  %v456 = vmul.f32 %v347, %v454
  %v457 = vsel %vm23, %v455, 0.0
  %458 = vadd.xlane.f32.xlu0 %v457
  %v459 = vpop.xlane.xlu0 %458
  %v460 = vsel %vm23, %v456, 0.0
  %461 = vadd.xlane.f32.xlu0 %v460
  %v462 = vpop.xlane.xlu0 %461
  %v463 = vmul.f32 %v448, %v459
  %v464 = vmul.f32 %v448, %v462
  %v465 = vtanh.pop %v463
  %v466 = vtanh.pop %v464
  %v467 = vlaneseq
  %v468 = vshrl.u32 %v467, 7
  %v469 = vadd.s32 %v468, 8
  %v470 = vlaneseq
  %v471 = vand.u32 %v470, 127
  %v472 = vlaneseq
  %v473 = vshrl.u32 %v472, 7
  %v474 = vsub.s32 0, %v473
  %v475 = vrot.slane %v450, %v474
  %vm476 = vcmp.gt.f32.partialorder %v465, %v475
  %vm477 = vcmp.gt.f32.partialorder %v466, %v475
  %vm478 = vcmp.eq.f32.partialorder %v465, %v475
  %vm479 = vcmp.eq.f32.partialorder %v466, %v475
  %vm480 = vcmp.lt.s32.totalorder %v468, %v471
  %vm481 = vcmp.lt.s32.totalorder %v469, %v471
  %vm482 = vmand %vm478, %vm480
  %vm483 = vmand %vm479, %vm481
  %vm484 = vmor %vm476, %vm482
  %vm485 = vmor %vm477, %vm483
  %v486 = vsel %vm484, 1, 0
  %v487 = vsel %vm485, 1, 0
  %v488 = vsel %vm23, %v486, 0
  %v489 = vsel %vm23, %v487, 0
  %v490 = vadd.s32 %v488, %v489
  %v491 = vrot.slane %v490, 4
  %v492 = vadd.s32 %v490, %v491
  %v493 = vrot.slane %v492, 2
  %v494 = vadd.s32 %v492, %v493
  %v495 = vrot.slane %v494, 1
  %v496 = vadd.s32 %v494, %v495
  %vm497 = vcmp.eq.s32.totalorder %v496, %v468
  %v498 = vsel %vm497, 1, 0
  %v499 = vcvt.s32.f32 %v498
  %v500 = vmul.f32 %v499, %v475
  %v502 = vsel %vm23, %v500, 0
  %504 = vmatprep.subr.mxu0 0.0
  %505 = vmatpush1.msra.mxu0 %v346
  %506 = vmatprep.subr.mxu0 0.0
  %507 = vmatpush1.msra.mxu0 %v347
  %508 = vmatprep.subr.mxu0 0.0
  %509 = vmatpush1.msra.mxu0 0.0
  %510 = vmatprep.subr.mxu0 0.0
  %511 = vmatpush1.msra.mxu0 0.0
  %512 = vmatprep.subr.mxu0 0.0
  %513 = vmatpush1.msra.mxu0 0.0
  %514 = vmatprep.subr.mxu0 0.0
  %515 = vmatpush1.msra.mxu0 0.0
  %516 = vmatprep.subr.mxu0 0.0
  %517 = vmatpush1.msra.mxu0 0.0
  %518 = vmatprep.subr.mxu0 0.0
  %519 = vmatpush1.msra.mxu0 0.0
  %520 = vmatprep.subr.mxu0 0.0
  %521 = vmatpush1.msra.mxu0 0.0
  %522 = vmatprep.subr.mxu0 0.0
  %523 = vmatpush1.msra.mxu0 0.0
  %524 = vmatprep.subr.mxu0 0.0
  %525 = vmatpush1.msra.mxu0 0.0
  %526 = vmatprep.subr.mxu0 0.0
  %527 = vmatpush1.msra.mxu0 0.0
  %528 = vmatprep.subr.mxu0 0.0
  %529 = vmatpush1.msra.mxu0 0.0
  %530 = vmatprep.subr.mxu0 0.0
  %531 = vmatpush1.msra.mxu0 0.0
  %532 = vmatprep.subr.mxu0 0.0
  %533 = vmatpush1.msra.mxu0 0.0
  %534 = vmatprep.subr.mxu0 0.0
  %535 = vmatpush1.msra.mxu0 0.0
  %536 = vmatprep.subr.mxu0 0.0
  %537 = vmatpush1.msra.mxu0 0.0
  %538 = vmatprep.subr.mxu0 0.0
  %539 = vmatpush1.msra.mxu0 0.0
  %540 = vmatprep.subr.mxu0 0.0
  %541 = vmatpush1.msra.mxu0 0.0
  %542 = vmatprep.subr.mxu0 0.0
  %543 = vmatpush1.msra.mxu0 0.0
  %544 = vmatprep.subr.mxu0 0.0
  %545 = vmatpush1.msra.mxu0 0.0
  %546 = vmatprep.subr.mxu0 0.0
  %547 = vmatpush1.msra.mxu0 0.0
  %548 = vmatprep.subr.mxu0 0.0
  %549 = vmatpush1.msra.mxu0 0.0
  %550 = vmatprep.subr.mxu0 0.0
  %551 = vmatpush1.msra.mxu0 0.0
  %552 = vmatprep.subr.mxu0 0.0
  %553 = vmatpush1.msra.mxu0 0.0
  %554 = vmatprep.subr.mxu0 0.0
  %555 = vmatpush1.msra.mxu0 0.0
  %556 = vmatprep.subr.mxu0 0.0
  %557 = vmatpush1.msra.mxu0 0.0
  %558 = vmatprep.subr.mxu0 0.0
  %559 = vmatpush1.msra.mxu0 0.0
  %560 = vmatprep.subr.mxu0 0.0
  %561 = vmatpush1.msra.mxu0 0.0
  %562 = vmatprep.subr.mxu0 0.0
  %563 = vmatpush1.msra.mxu0 0.0
  %564 = vmatprep.subr.mxu0 0.0
  %565 = vmatpush1.msra.mxu0 0.0
  %566 = vmatprep.subr.mxu0 0.0
  %567 = vmatpush1.msra.mxu0 0.0
  %568 = vmatprep.mubr.f32.mxu0 0.0
  %569 = vmatmul.mubr.f32.gmra.mrb[0].mxu0 %v502
  %v570 = vpop.f32.mrb[0].mxu0
  %v571 = vadd.f32 0.0, %v570
  %v572 = vpop.f32.mrb[0].mxu0
  %573 = vdwg.mxu0
  %v575 = vsel %vm23, %v499, 0
  %577 = vmatprep.subr.mxu0 0.0
  %578 = vmatpush1.msra.mxu0 %v14
  %579 = vmatprep.subr.mxu0 0.0
  %580 = vmatpush1.msra.mxu0 %v15
  %581 = vmatprep.subr.mxu0 0.0
  %582 = vmatpush1.msra.mxu0 0.0
  %583 = vmatprep.subr.mxu0 0.0
  %584 = vmatpush1.msra.mxu0 0.0
  %585 = vmatprep.subr.mxu0 0.0
  %586 = vmatpush1.msra.mxu0 0.0
  %587 = vmatprep.subr.mxu0 0.0
  %588 = vmatpush1.msra.mxu0 0.0
  %589 = vmatprep.subr.mxu0 0.0
  %590 = vmatpush1.msra.mxu0 0.0
  %591 = vmatprep.subr.mxu0 0.0
  %592 = vmatpush1.msra.mxu0 0.0
  %593 = vmatprep.subr.mxu0 0.0
  %594 = vmatpush1.msra.mxu0 0.0
  %595 = vmatprep.subr.mxu0 0.0
  %596 = vmatpush1.msra.mxu0 0.0
  %597 = vmatprep.subr.mxu0 0.0
  %598 = vmatpush1.msra.mxu0 0.0
  %599 = vmatprep.subr.mxu0 0.0
  %600 = vmatpush1.msra.mxu0 0.0
  %601 = vmatprep.subr.mxu0 0.0
  %602 = vmatpush1.msra.mxu0 0.0
  %603 = vmatprep.subr.mxu0 0.0
  %604 = vmatpush1.msra.mxu0 0.0
  %605 = vmatprep.subr.mxu0 0.0
  %606 = vmatpush1.msra.mxu0 0.0
  %607 = vmatprep.subr.mxu0 0.0
  %608 = vmatpush1.msra.mxu0 0.0
  %609 = vmatprep.subr.mxu0 0.0
  %610 = vmatpush1.msra.mxu0 0.0
  %611 = vmatprep.subr.mxu0 0.0
  %612 = vmatpush1.msra.mxu0 0.0
  %613 = vmatprep.subr.mxu0 0.0
  %614 = vmatpush1.msra.mxu0 0.0
  %615 = vmatprep.subr.mxu0 0.0
  %616 = vmatpush1.msra.mxu0 0.0
  %617 = vmatprep.subr.mxu0 0.0
  %618 = vmatpush1.msra.mxu0 0.0
  %619 = vmatprep.subr.mxu0 0.0
  %620 = vmatpush1.msra.mxu0 0.0
  %621 = vmatprep.subr.mxu0 0.0
  %622 = vmatpush1.msra.mxu0 0.0
  %623 = vmatprep.subr.mxu0 0.0
  %624 = vmatpush1.msra.mxu0 0.0
  %625 = vmatprep.subr.mxu0 0.0
  %626 = vmatpush1.msra.mxu0 0.0
  %627 = vmatprep.subr.mxu0 0.0
  %628 = vmatpush1.msra.mxu0 0.0
  %629 = vmatprep.subr.mxu0 0.0
  %630 = vmatpush1.msra.mxu0 0.0
  %631 = vmatprep.subr.mxu0 0.0
  %632 = vmatpush1.msra.mxu0 0.0
  %633 = vmatprep.subr.mxu0 0.0
  %634 = vmatpush1.msra.mxu0 0.0
  %635 = vmatprep.subr.mxu0 0.0
  %636 = vmatpush1.msra.mxu0 0.0
  %637 = vmatprep.subr.mxu0 0.0
  %638 = vmatpush1.msra.mxu0 0.0
  %639 = vmatprep.subr.mxu0 0.0
  %640 = vmatpush1.msra.mxu0 0.0
  %641 = vmatprep.mubr.f32.mxu0 0.0
  %642 = vmatmul.mubr.f32.gmra.mrb[0].mxu0 %v575
  %v643 = vpop.f32.mrb[0].mxu0
  %v644 = vadd.f32 0.0, %v643
  %v645 = vpop.f32.mrb[0].mxu0
  %646 = vdwg.mxu0
  %v648 = vsel %vm23, %v644, 0
  %650 = vmatprep.subr.mxu0 0.0
  %651 = vmatpush1.xpose.msra.mxu0 %v575
  %652 = vmatprep.subr.mxu0 0.0
  %653 = vmatpush1.xpose.msra.mxu0 0.0
  %654 = vmatprep.subr.mxu0 0.0
  %655 = vmatpush1.xpose.msra.mxu0 0.0
  %656 = vmatprep.subr.mxu0 0.0
  %657 = vmatpush1.xpose.msra.mxu0 0.0
  %658 = vmatprep.subr.mxu0 0.0
  %659 = vmatpush1.xpose.msra.mxu0 0.0
  %660 = vmatprep.subr.mxu0 0.0
  %661 = vmatpush1.xpose.msra.mxu0 0.0
  %662 = vmatprep.subr.mxu0 0.0
  %663 = vmatpush1.xpose.msra.mxu0 0.0
  %664 = vmatprep.subr.mxu0 0.0
  %665 = vmatpush1.xpose.msra.mxu0 0.0
  %666 = vmatprep.subr.mxu0 0.0
  %667 = vmatpush1.xpose.msra.mxu0 0.0
  %668 = vmatprep.subr.mxu0 0.0
  %669 = vmatpush1.xpose.msra.mxu0 0.0
  %670 = vmatprep.subr.mxu0 0.0
  %671 = vmatpush1.xpose.msra.mxu0 0.0
  %672 = vmatprep.subr.mxu0 0.0
  %673 = vmatpush1.xpose.msra.mxu0 0.0
  %674 = vmatprep.subr.mxu0 0.0
  %675 = vmatpush1.xpose.msra.mxu0 0.0
  %676 = vmatprep.subr.mxu0 0.0
  %677 = vmatpush1.xpose.msra.mxu0 0.0
  %678 = vmatprep.subr.mxu0 0.0
  %679 = vmatpush1.xpose.msra.mxu0 0.0
  %680 = vmatprep.subr.mxu0 0.0
  %681 = vmatpush1.xpose.msra.mxu0 0.0
  %682 = vmatprep.subr.mxu0 0.0
  %683 = vmatpush1.xpose.msra.mxu0 0.0
  %684 = vmatprep.subr.mxu0 0.0
  %685 = vmatpush1.xpose.msra.mxu0 0.0
  %686 = vmatprep.subr.mxu0 0.0
  %687 = vmatpush1.xpose.msra.mxu0 0.0
  %688 = vmatprep.subr.mxu0 0.0
  %689 = vmatpush1.xpose.msra.mxu0 0.0
  %690 = vmatprep.subr.mxu0 0.0
  %691 = vmatpush1.xpose.msra.mxu0 0.0
  %692 = vmatprep.subr.mxu0 0.0
  %693 = vmatpush1.xpose.msra.mxu0 0.0
  %694 = vmatprep.subr.mxu0 0.0
  %695 = vmatpush1.xpose.msra.mxu0 0.0
  %696 = vmatprep.subr.mxu0 0.0
  %697 = vmatpush1.xpose.msra.mxu0 0.0
  %698 = vmatprep.subr.mxu0 0.0
  %699 = vmatpush1.xpose.msra.mxu0 0.0
  %700 = vmatprep.subr.mxu0 0.0
  %701 = vmatpush1.xpose.msra.mxu0 0.0
  %702 = vmatprep.subr.mxu0 0.0
  %703 = vmatpush1.xpose.msra.mxu0 0.0
  %704 = vmatprep.subr.mxu0 0.0
  %705 = vmatpush1.xpose.msra.mxu0 0.0
  %706 = vmatprep.subr.mxu0 0.0
  %707 = vmatpush1.xpose.msra.mxu0 0.0
  %708 = vmatprep.subr.mxu0 0.0
  %709 = vmatpush1.xpose.msra.mxu0 0.0
  %710 = vmatprep.subr.mxu0 0.0
  %711 = vmatpush1.xpose.msra.mxu0 0.0
  %712 = vmatprep.subr.mxu0 0.0
  %713 = vmatpush1.xpose.msra.mxu0 0.0
  %714 = vmatprep.mubr.f32.mxu0 0.0
  %715 = vmatmul.mubr.f32.gmra.mrb[0].mxu0 %v648
  %v716 = vpop.f32.mrb[0].mxu0
  %v717 = vadd.f32 0.0, %v716
  %v718 = vpop.f32.mrb[0].mxu0
  %719 = vdwg.mxu0
  %v720 = vld [vmem:[%s2 + $0x10] sm:$0xff]
  %v721 = vld [vmem:[%s2 + $0x18] sm:$0xff]
  %v722 = vld [vmem:[%s2 + $0x20] sm:$0xff]
  %v723 = vld [vmem:[%s2 + $0x28] sm:$0xff]
  %vm724 = vcmask 64512
  %v725 = vsel %vm724, %v717, 0.0
  %726 = vadd.xlane.f32.xlu0 %v725
  %v727 = vpop.xlane.xlu0 %726
  %vm728 = vcmp.gt.f32.partialorder %v727, 0.0
  %v729 = vmax.f32 %v727, 1e-12
  %v730 = vrsqrt.pop %v729
  %v731 = vsel %vm728, %v730, 0.0
  %v732 = vsub.f32 0.0, %v731
  %v733 = vmul.f32 %v731, %v571
  %v735 = vsel %vm724, %v717, 0
  %737 = vmatprep.subr.mxu0 0.0
  %738 = vmatpush1.msra.mxu0 %v733
  %739 = vmatprep.subr.mxu0 0.0
  %740 = vmatpush1.msra.mxu0 0.0
  %741 = vmatprep.subr.mxu0 0.0
  %742 = vmatpush1.msra.mxu0 0.0
  %743 = vmatprep.subr.mxu0 0.0
  %744 = vmatpush1.msra.mxu0 0.0
  %745 = vmatprep.subr.mxu0 0.0
  %746 = vmatpush1.msra.mxu0 0.0
  %747 = vmatprep.subr.mxu0 0.0
  %748 = vmatpush1.msra.mxu0 0.0
  %749 = vmatprep.subr.mxu0 0.0
  %750 = vmatpush1.msra.mxu0 0.0
  %751 = vmatprep.subr.mxu0 0.0
  %752 = vmatpush1.msra.mxu0 0.0
  %753 = vmatprep.subr.mxu0 0.0
  %754 = vmatpush1.msra.mxu0 0.0
  %755 = vmatprep.subr.mxu0 0.0
  %756 = vmatpush1.msra.mxu0 0.0
  %757 = vmatprep.subr.mxu0 0.0
  %758 = vmatpush1.msra.mxu0 0.0
  %759 = vmatprep.subr.mxu0 0.0
  %760 = vmatpush1.msra.mxu0 0.0
  %761 = vmatprep.subr.mxu0 0.0
  %762 = vmatpush1.msra.mxu0 0.0
  %763 = vmatprep.subr.mxu0 0.0
  %764 = vmatpush1.msra.mxu0 0.0
  %765 = vmatprep.subr.mxu0 0.0
  %766 = vmatpush1.msra.mxu0 0.0
  %767 = vmatprep.subr.mxu0 0.0
  %768 = vmatpush1.msra.mxu0 0.0
  %769 = vmatprep.subr.mxu0 0.0
  %770 = vmatpush1.msra.mxu0 0.0
  %771 = vmatprep.subr.mxu0 0.0
  %772 = vmatpush1.msra.mxu0 0.0
  %773 = vmatprep.subr.mxu0 0.0
  %774 = vmatpush1.msra.mxu0 0.0
  %775 = vmatprep.subr.mxu0 0.0
  %776 = vmatpush1.msra.mxu0 0.0
  %777 = vmatprep.subr.mxu0 0.0
  %778 = vmatpush1.msra.mxu0 0.0
  %779 = vmatprep.subr.mxu0 0.0
  %780 = vmatpush1.msra.mxu0 0.0
  %781 = vmatprep.subr.mxu0 0.0
  %782 = vmatpush1.msra.mxu0 0.0
  %783 = vmatprep.subr.mxu0 0.0
  %784 = vmatpush1.msra.mxu0 0.0
  %785 = vmatprep.subr.mxu0 0.0
  %786 = vmatpush1.msra.mxu0 0.0
  %787 = vmatprep.subr.mxu0 0.0
  %788 = vmatpush1.msra.mxu0 0.0
  %789 = vmatprep.subr.mxu0 0.0
  %790 = vmatpush1.msra.mxu0 0.0
  %791 = vmatprep.subr.mxu0 0.0
  %792 = vmatpush1.msra.mxu0 0.0
  %793 = vmatprep.subr.mxu0 0.0
  %794 = vmatpush1.msra.mxu0 0.0
  %795 = vmatprep.subr.mxu0 0.0
  %796 = vmatpush1.msra.mxu0 0.0
  %797 = vmatprep.subr.mxu0 0.0
  %798 = vmatpush1.msra.mxu0 0.0
  %799 = vmatprep.subr.mxu0 0.0
  %800 = vmatpush1.msra.mxu0 0.0
  %801 = vmatprep.mubr.f32.mxu0 0.0
  %802 = vmatmul.mubr.f32.gmra.mrb[0].mxu0 %v735
  %v803 = vpop.f32.mrb[0].mxu0
  %v804 = vadd.f32 0.0, %v803
  %v805 = vpop.f32.mrb[0].mxu0
  %806 = vdwg.mxu0
  %v807 = vmul.f32 %v732, %v804
  %v809 = vsel %vm23, %v807, 0
  %811 = vmatprep.subr.mxu0 0.0
  %812 = vmatpush1.msra.mxu0 %v722
  %813 = vmatprep.subr.mxu0 0.0
  %814 = vmatpush1.msra.mxu0 %v723
  %815 = vmatprep.subr.mxu0 0.0
  %816 = vmatpush1.msra.mxu0 0.0
  %817 = vmatprep.subr.mxu0 0.0
  %818 = vmatpush1.msra.mxu0 0.0
  %819 = vmatprep.subr.mxu0 0.0
  %820 = vmatpush1.msra.mxu0 0.0
  %821 = vmatprep.subr.mxu0 0.0
  %822 = vmatpush1.msra.mxu0 0.0
  %823 = vmatprep.subr.mxu0 0.0
  %824 = vmatpush1.msra.mxu0 0.0
  %825 = vmatprep.subr.mxu0 0.0
  %826 = vmatpush1.msra.mxu0 0.0
  %827 = vmatprep.subr.mxu0 0.0
  %828 = vmatpush1.msra.mxu0 0.0
  %829 = vmatprep.subr.mxu0 0.0
  %830 = vmatpush1.msra.mxu0 0.0
  %831 = vmatprep.subr.mxu0 0.0
  %832 = vmatpush1.msra.mxu0 0.0
  %833 = vmatprep.subr.mxu0 0.0
  %834 = vmatpush1.msra.mxu0 0.0
  %835 = vmatprep.subr.mxu0 0.0
  %836 = vmatpush1.msra.mxu0 0.0
  %837 = vmatprep.subr.mxu0 0.0
  %838 = vmatpush1.msra.mxu0 0.0
  %839 = vmatprep.subr.mxu0 0.0
  %840 = vmatpush1.msra.mxu0 0.0
  %841 = vmatprep.subr.mxu0 0.0
  %842 = vmatpush1.msra.mxu0 0.0
  %843 = vmatprep.subr.mxu0 0.0
  %844 = vmatpush1.msra.mxu0 0.0
  %845 = vmatprep.subr.mxu0 0.0
  %846 = vmatpush1.msra.mxu0 0.0
  %847 = vmatprep.subr.mxu0 0.0
  %848 = vmatpush1.msra.mxu0 0.0
  %849 = vmatprep.subr.mxu0 0.0
  %850 = vmatpush1.msra.mxu0 0.0
  %851 = vmatprep.subr.mxu0 0.0
  %852 = vmatpush1.msra.mxu0 0.0
  %853 = vmatprep.subr.mxu0 0.0
  %854 = vmatpush1.msra.mxu0 0.0
  %855 = vmatprep.subr.mxu0 0.0
  %856 = vmatpush1.msra.mxu0 0.0
  %857 = vmatprep.subr.mxu0 0.0
  %858 = vmatpush1.msra.mxu0 0.0
  %859 = vmatprep.subr.mxu0 0.0
  %860 = vmatpush1.msra.mxu0 0.0
  %861 = vmatprep.subr.mxu0 0.0
  %862 = vmatpush1.msra.mxu0 0.0
  %863 = vmatprep.subr.mxu0 0.0
  %864 = vmatpush1.msra.mxu0 0.0
  %865 = vmatprep.subr.mxu0 0.0
  %866 = vmatpush1.msra.mxu0 0.0
  %867 = vmatprep.subr.mxu0 0.0
  %868 = vmatpush1.msra.mxu0 0.0
  %869 = vmatprep.subr.mxu0 0.0
  %870 = vmatpush1.msra.mxu0 0.0
  %871 = vmatprep.subr.mxu0 0.0
  %872 = vmatpush1.msra.mxu0 0.0
  %873 = vmatprep.subr.mxu0 0.0
  %874 = vmatpush1.msra.mxu0 0.0
  %875 = vmatprep.mubr.f32.mxu0 0.0
  %876 = vmatmul.mubr.f32.gmra.mrb[0].mxu0 %v809
  %v877 = vpop.f32.mrb[0].mxu0
  %v878 = vadd.f32 0.0, %v877
  %v879 = vpop.f32.mrb[0].mxu0
  %880 = vdwg.mxu0
  %v882 = vsel %vm23, %v571, 0
  %884 = vmatprep.subr.mxu0 0.0
  %885 = vmatpush1.msra.mxu0 %v720
  %886 = vmatprep.subr.mxu0 0.0
  %887 = vmatpush1.msra.mxu0 %v721
  %888 = vmatprep.subr.mxu0 0.0
  %889 = vmatpush1.msra.mxu0 0.0
  %890 = vmatprep.subr.mxu0 0.0
  %891 = vmatpush1.msra.mxu0 0.0
  %892 = vmatprep.subr.mxu0 0.0
  %893 = vmatpush1.msra.mxu0 0.0
  %894 = vmatprep.subr.mxu0 0.0
  %895 = vmatpush1.msra.mxu0 0.0
  %896 = vmatprep.subr.mxu0 0.0
  %897 = vmatpush1.msra.mxu0 0.0
  %898 = vmatprep.subr.mxu0 0.0
  %899 = vmatpush1.msra.mxu0 0.0
  %900 = vmatprep.subr.mxu0 0.0
  %901 = vmatpush1.msra.mxu0 0.0
  %902 = vmatprep.subr.mxu0 0.0
  %903 = vmatpush1.msra.mxu0 0.0
  %904 = vmatprep.subr.mxu0 0.0
  %905 = vmatpush1.msra.mxu0 0.0
  %906 = vmatprep.subr.mxu0 0.0
  %907 = vmatpush1.msra.mxu0 0.0
  %908 = vmatprep.subr.mxu0 0.0
  %909 = vmatpush1.msra.mxu0 0.0
  %910 = vmatprep.subr.mxu0 0.0
  %911 = vmatpush1.msra.mxu0 0.0
  %912 = vmatprep.subr.mxu0 0.0
  %913 = vmatpush1.msra.mxu0 0.0
  %914 = vmatprep.subr.mxu0 0.0
  %915 = vmatpush1.msra.mxu0 0.0
  %916 = vmatprep.subr.mxu0 0.0
  %917 = vmatpush1.msra.mxu0 0.0
  %918 = vmatprep.subr.mxu0 0.0
  %919 = vmatpush1.msra.mxu0 0.0
  %920 = vmatprep.subr.mxu0 0.0
  %921 = vmatpush1.msra.mxu0 0.0
  %922 = vmatprep.subr.mxu0 0.0
  %923 = vmatpush1.msra.mxu0 0.0
  %924 = vmatprep.subr.mxu0 0.0
  %925 = vmatpush1.msra.mxu0 0.0
  %926 = vmatprep.subr.mxu0 0.0
  %927 = vmatpush1.msra.mxu0 0.0
  %928 = vmatprep.subr.mxu0 0.0
  %929 = vmatpush1.msra.mxu0 0.0
  %930 = vmatprep.subr.mxu0 0.0
  %931 = vmatpush1.msra.mxu0 0.0
  %932 = vmatprep.subr.mxu0 0.0
  %933 = vmatpush1.msra.mxu0 0.0
  %934 = vmatprep.subr.mxu0 0.0
  %935 = vmatpush1.msra.mxu0 0.0
  %936 = vmatprep.subr.mxu0 0.0
  %937 = vmatpush1.msra.mxu0 0.0
  %938 = vmatprep.subr.mxu0 0.0
  %939 = vmatpush1.msra.mxu0 0.0
  %940 = vmatprep.subr.mxu0 0.0
  %941 = vmatpush1.msra.mxu0 0.0
  %942 = vmatprep.subr.mxu0 0.0
  %943 = vmatpush1.msra.mxu0 0.0
  %944 = vmatprep.subr.mxu0 0.0
  %945 = vmatpush1.msra.mxu0 0.0
  %946 = vmatprep.subr.mxu0 0.0
  %947 = vmatpush1.msra.mxu0 0.0
  %948 = vmatprep.mubr.f32.mxu0 0.0
  %949 = vmatmul.mubr.f32.gmra.mrb[0].mxu0 %v882
  %v950 = vpop.f32.mrb[0].mxu0
  %v951 = vadd.f32 %v878, %v950
  %v952 = vpop.f32.mrb[0].mxu0
  %953 = vdwg.mxu0
  %v954 = vlaneseq
  %v955 = vshrl.u32 %v954, 7
  %v956 = vsub.s32 0, %v955
  %v957 = vrot.slane %v17, %v956
  %v958 = vadd.f32 %v951, %v957
  %v959 = vsel %vm23, %v958, 0.0
  %v960 = vrot.slane %v959, 4
  %v961 = vadd.f32 %v959, %v960
  %v962 = vrot.slane %v961, 2
  %v963 = vadd.f32 %v961, %v962
  %v964 = vrot.slane %v963, 1
  %v965 = vadd.f32 %v963, %v964
  %v966 = vmul.f32 %v965, 0.125
  %v967 = vmul.f32 %v966, %v17
  %v968 = vlaneseq
  %v969 = vshrl.u32 %v968, 7
  %v970 = vsub.s32 3, %v969
  %v971 = vrot.slane %v967, %v970
  %v972 = vsub.f32 %v958, %v971
  %v973 = vmul.f32 %v972, %v972
  %v974 = vsel %vm23, %v973, 0.0
  %v975 = vrot.slane %v974, 4
  %v976 = vadd.f32 %v974, %v975
  %v977 = vrot.slane %v976, 2
  %v978 = vadd.f32 %v976, %v977
  %v979 = vrot.slane %v978, 1
  %v980 = vadd.f32 %v978, %v979
  %v981 = vmul.f32 %v980, 0.125
  %v982 = vadd.f32 %v981, 1e-05
  %v983 = vrsqrt.pop %v982
  %v984 = vmul.f32 %v972, %v983
  %v985 = vlaneseq
  %v986 = vshrl.u32 %v985, 7
  %v987 = vsub.s32 1, %v986
  %v988 = vrot.slane %v17, %v987
  %v989 = vmul.f32 %v984, %v988
  %v990 = vlaneseq
  %v991 = vshrl.u32 %v990, 7
  %v992 = vsub.s32 2, %v991
  %v993 = vrot.slane %v17, %v992
  %v994 = vadd.f32 %v989, %v993
  %v995 = vmax.f32 %v994, 0.0
  %996 = vst.msk [vmem:[%s3 + $0x10] sm:$0xff] %vm23, %v995
  %v997 = vmul.f32 %v17, %v17
  %v999 = vrot.slane %v997, 4
  %v1001 = vsel %vm354, %v999, 0.0
  %1002 = vadd.xlane.f32.xlu0 %v1001
  %v1003 = vpop.xlane.xlu0 %1002
  %v1004 = vrot.slane %v1003, 4
  %v1005 = vadd.f32 %v1003, %v1004
  %v1006 = vrot.slane %v1005, 2
  %v1007 = vadd.f32 %v1005, %v1006
  %v1008 = vrot.slane %v1007, 1
  %v1009 = vadd.f32 %v1007, %v1008
  %s1010 = vtos %v1009
  %v1011 = vstv %s1010
  %v1012 = vrsqrt.pop %v1011
  %s1013 = vtos %v1012
  %v1015 = vrot.slane %v17, 4
  %v1016 = vsel %vm23, %v1015, 0
  %v1019 = vsel %vm23, %v995, 0
  %1021 = vmatprep.subr.mxu0 0.0
  %1022 = vmatpush1.xpose.msra.mxu0 %v1019
  %1023 = vmatprep.subr.mxu0 0.0
  %1024 = vmatpush1.xpose.msra.mxu0 0.0
  %1025 = vmatprep.subr.mxu0 0.0
  %1026 = vmatpush1.xpose.msra.mxu0 0.0
  %1027 = vmatprep.subr.mxu0 0.0
  %1028 = vmatpush1.xpose.msra.mxu0 0.0
  %1029 = vmatprep.subr.mxu0 0.0
  %1030 = vmatpush1.xpose.msra.mxu0 0.0
  %1031 = vmatprep.subr.mxu0 0.0
  %1032 = vmatpush1.xpose.msra.mxu0 0.0
  %1033 = vmatprep.subr.mxu0 0.0
  %1034 = vmatpush1.xpose.msra.mxu0 0.0
  %1035 = vmatprep.subr.mxu0 0.0
  %1036 = vmatpush1.xpose.msra.mxu0 0.0
  %1037 = vmatprep.subr.mxu0 0.0
  %1038 = vmatpush1.xpose.msra.mxu0 0.0
  %1039 = vmatprep.subr.mxu0 0.0
  %1040 = vmatpush1.xpose.msra.mxu0 0.0
  %1041 = vmatprep.subr.mxu0 0.0
  %1042 = vmatpush1.xpose.msra.mxu0 0.0
  %1043 = vmatprep.subr.mxu0 0.0
  %1044 = vmatpush1.xpose.msra.mxu0 0.0
  %1045 = vmatprep.subr.mxu0 0.0
  %1046 = vmatpush1.xpose.msra.mxu0 0.0
  %1047 = vmatprep.subr.mxu0 0.0
  %1048 = vmatpush1.xpose.msra.mxu0 0.0
  %1049 = vmatprep.subr.mxu0 0.0
  %1050 = vmatpush1.xpose.msra.mxu0 0.0
  %1051 = vmatprep.subr.mxu0 0.0
  %1052 = vmatpush1.xpose.msra.mxu0 0.0
  %1053 = vmatprep.subr.mxu0 0.0
  %1054 = vmatpush1.xpose.msra.mxu0 0.0
  %1055 = vmatprep.subr.mxu0 0.0
  %1056 = vmatpush1.xpose.msra.mxu0 0.0
  %1057 = vmatprep.subr.mxu0 0.0
  %1058 = vmatpush1.xpose.msra.mxu0 0.0
  %1059 = vmatprep.subr.mxu0 0.0
  %1060 = vmatpush1.xpose.msra.mxu0 0.0
  %1061 = vmatprep.subr.mxu0 0.0
  %1062 = vmatpush1.xpose.msra.mxu0 0.0
  %1063 = vmatprep.subr.mxu0 0.0
  %1064 = vmatpush1.xpose.msra.mxu0 0.0
  %1065 = vmatprep.subr.mxu0 0.0
  %1066 = vmatpush1.xpose.msra.mxu0 0.0
  %1067 = vmatprep.subr.mxu0 0.0
  %1068 = vmatpush1.xpose.msra.mxu0 0.0
  %1069 = vmatprep.subr.mxu0 0.0
  %1070 = vmatpush1.xpose.msra.mxu0 0.0
  %1071 = vmatprep.subr.mxu0 0.0
  %1072 = vmatpush1.xpose.msra.mxu0 0.0
  %1073 = vmatprep.subr.mxu0 0.0
  %1074 = vmatpush1.xpose.msra.mxu0 0.0
  %1075 = vmatprep.subr.mxu0 0.0
  %1076 = vmatpush1.xpose.msra.mxu0 0.0
  %1077 = vmatprep.subr.mxu0 0.0
  %1078 = vmatpush1.xpose.msra.mxu0 0.0
  %1079 = vmatprep.subr.mxu0 0.0
  %1080 = vmatpush1.xpose.msra.mxu0 0.0
  %1081 = vmatprep.subr.mxu0 0.0
  %1082 = vmatpush1.xpose.msra.mxu0 0.0
  %1083 = vmatprep.subr.mxu0 0.0
  %1084 = vmatpush1.xpose.msra.mxu0 0.0
  %1085 = vmatprep.mubr.f32.mxu0 0.0
  %1086 = vmatmul.mubr.f32.gmra.mrb[0].mxu0 %v1016
  %v1087 = vpop.f32.mrb[0].mxu0
  %v1088 = vadd.f32 0.0, %v1087
  %v1089 = vpop.f32.mrb[0].mxu0
  %1090 = vdwg.mxu0
  %v1091 = vstv %s1013
  %v1092 = vmul.f32 %v1091, %v1088
  %v1093 = vtanh.pop %v1092
  %v1094 = vlaneseq
  %v1095 = vshrl.u32 %v1094, 7
  %v1096 = vsub.s32 4, %v1095
  %v1097 = vrot.slane %v17, %v1096
  %v1098 = vmul.f32 %v995, %v1097
  %v1099 = vsel %vm23, %v1098, 0.0
  %1100 = vadd.xlane.f32.xlu0 %v1099
  %v1101 = vpop.xlane.xlu0 %1100
  %v1102 = vmul.f32 %v1091, %v1101
  %v1103 = vtanh.pop %v1102
  %v1104 = vlaneseq
  %v1105 = vshrl.u32 %v1104, 7
  %v1106 = vsub.s32 0, %v1105
  %v1107 = vrot.slane %v1093, %v1106
  %vm1108 = vcmp.gt.f32.partialorder %v1103, %v1107
  %vm1109 = vcmp.eq.f32.partialorder %v1103, %v1107
  %vm1110 = vmand %vm1109, %vm480
  %vm1111 = vmor %vm1108, %vm1110
  %v1112 = vsel %vm1111, 1, 0
  %v1113 = vsel %vm724, %v1112, 0
  %v1114 = vrot.slane %v1113, 4
  %v1115 = vadd.s32 %v1113, %v1114
  %v1116 = vrot.slane %v1115, 2
  %v1117 = vadd.s32 %v1115, %v1116
  %v1118 = vrot.slane %v1117, 1
  %v1119 = vadd.s32 %v1117, %v1118
  %vm1120 = vcmp.eq.s32.totalorder %v1119, %v468
  %v1121 = vsel %vm1120, 1, 0
  %v1122 = vcvt.s32.f32 %v1121
  %v1123 = vmul.f32 %v1122, %v1107
  %v1125 = vsel %vm724, %v1123, 0
  %1127 = vmatprep.subr.mxu0 0.0
  %1128 = vmatpush1.msra.mxu0 %v995
  %1129 = vmatprep.subr.mxu0 0.0
  %1130 = vmatpush1.msra.mxu0 0.0
  %1131 = vmatprep.subr.mxu0 0.0
  %1132 = vmatpush1.msra.mxu0 0.0
  %1133 = vmatprep.subr.mxu0 0.0
  %1134 = vmatpush1.msra.mxu0 0.0
  %1135 = vmatprep.subr.mxu0 0.0
  %1136 = vmatpush1.msra.mxu0 0.0
  %1137 = vmatprep.subr.mxu0 0.0
  %1138 = vmatpush1.msra.mxu0 0.0
  %1139 = vmatprep.subr.mxu0 0.0
  %1140 = vmatpush1.msra.mxu0 0.0
  %1141 = vmatprep.subr.mxu0 0.0
  %1142 = vmatpush1.msra.mxu0 0.0
  %1143 = vmatprep.subr.mxu0 0.0
  %1144 = vmatpush1.msra.mxu0 0.0
  %1145 = vmatprep.subr.mxu0 0.0
  %1146 = vmatpush1.msra.mxu0 0.0
  %1147 = vmatprep.subr.mxu0 0.0
  %1148 = vmatpush1.msra.mxu0 0.0
  %1149 = vmatprep.subr.mxu0 0.0
  %1150 = vmatpush1.msra.mxu0 0.0
  %1151 = vmatprep.subr.mxu0 0.0
  %1152 = vmatpush1.msra.mxu0 0.0
  %1153 = vmatprep.subr.mxu0 0.0
  %1154 = vmatpush1.msra.mxu0 0.0
  %1155 = vmatprep.subr.mxu0 0.0
  %1156 = vmatpush1.msra.mxu0 0.0
  %1157 = vmatprep.subr.mxu0 0.0
  %1158 = vmatpush1.msra.mxu0 0.0
  %1159 = vmatprep.subr.mxu0 0.0
  %1160 = vmatpush1.msra.mxu0 0.0
  %1161 = vmatprep.subr.mxu0 0.0
  %1162 = vmatpush1.msra.mxu0 0.0
  %1163 = vmatprep.subr.mxu0 0.0
  %1164 = vmatpush1.msra.mxu0 0.0
  %1165 = vmatprep.subr.mxu0 0.0
  %1166 = vmatpush1.msra.mxu0 0.0
  %1167 = vmatprep.subr.mxu0 0.0
  %1168 = vmatpush1.msra.mxu0 0.0
  %1169 = vmatprep.subr.mxu0 0.0
  %1170 = vmatpush1.msra.mxu0 0.0
  %1171 = vmatprep.subr.mxu0 0.0
  %1172 = vmatpush1.msra.mxu0 0.0
  %1173 = vmatprep.subr.mxu0 0.0
  %1174 = vmatpush1.msra.mxu0 0.0
  %1175 = vmatprep.subr.mxu0 0.0
  %1176 = vmatpush1.msra.mxu0 0.0
  %1177 = vmatprep.subr.mxu0 0.0
  %1178 = vmatpush1.msra.mxu0 0.0
  %1179 = vmatprep.subr.mxu0 0.0
  %1180 = vmatpush1.msra.mxu0 0.0
  %1181 = vmatprep.subr.mxu0 0.0
  %1182 = vmatpush1.msra.mxu0 0.0
  %1183 = vmatprep.subr.mxu0 0.0
  %1184 = vmatpush1.msra.mxu0 0.0
  %1185 = vmatprep.subr.mxu0 0.0
  %1186 = vmatpush1.msra.mxu0 0.0
  %1187 = vmatprep.subr.mxu0 0.0
  %1188 = vmatpush1.msra.mxu0 0.0
  %1189 = vmatprep.subr.mxu0 0.0
  %1190 = vmatpush1.msra.mxu0 0.0
  %1191 = vmatprep.mubr.f32.mxu0 0.0
  %1192 = vmatmul.mubr.f32.gmra.mrb[0].mxu0 %v1125
  %v1193 = vpop.f32.mrb[0].mxu0
  %v1194 = vadd.f32 0.0, %v1193
  %v1195 = vpop.f32.mrb[0].mxu0
  %1196 = vdwg.mxu0
  %v1198 = vsel %vm724, %v1122, 0
  %1200 = vmatprep.subr.mxu0 0.0
  %1201 = vmatpush1.msra.mxu0 %v717
  %1202 = vmatprep.subr.mxu0 0.0
  %1203 = vmatpush1.msra.mxu0 0.0
  %1204 = vmatprep.subr.mxu0 0.0
  %1205 = vmatpush1.msra.mxu0 0.0
  %1206 = vmatprep.subr.mxu0 0.0
  %1207 = vmatpush1.msra.mxu0 0.0
  %1208 = vmatprep.subr.mxu0 0.0
  %1209 = vmatpush1.msra.mxu0 0.0
  %1210 = vmatprep.subr.mxu0 0.0
  %1211 = vmatpush1.msra.mxu0 0.0
  %1212 = vmatprep.subr.mxu0 0.0
  %1213 = vmatpush1.msra.mxu0 0.0
  %1214 = vmatprep.subr.mxu0 0.0
  %1215 = vmatpush1.msra.mxu0 0.0
  %1216 = vmatprep.subr.mxu0 0.0
  %1217 = vmatpush1.msra.mxu0 0.0
  %1218 = vmatprep.subr.mxu0 0.0
  %1219 = vmatpush1.msra.mxu0 0.0
  %1220 = vmatprep.subr.mxu0 0.0
  %1221 = vmatpush1.msra.mxu0 0.0
  %1222 = vmatprep.subr.mxu0 0.0
  %1223 = vmatpush1.msra.mxu0 0.0
  %1224 = vmatprep.subr.mxu0 0.0
  %1225 = vmatpush1.msra.mxu0 0.0
  %1226 = vmatprep.subr.mxu0 0.0
  %1227 = vmatpush1.msra.mxu0 0.0
  %1228 = vmatprep.subr.mxu0 0.0
  %1229 = vmatpush1.msra.mxu0 0.0
  %1230 = vmatprep.subr.mxu0 0.0
  %1231 = vmatpush1.msra.mxu0 0.0
  %1232 = vmatprep.subr.mxu0 0.0
  %1233 = vmatpush1.msra.mxu0 0.0
  %1234 = vmatprep.subr.mxu0 0.0
  %1235 = vmatpush1.msra.mxu0 0.0
  %1236 = vmatprep.subr.mxu0 0.0
  %1237 = vmatpush1.msra.mxu0 0.0
  %1238 = vmatprep.subr.mxu0 0.0
  %1239 = vmatpush1.msra.mxu0 0.0
  %1240 = vmatprep.subr.mxu0 0.0
  %1241 = vmatpush1.msra.mxu0 0.0
  %1242 = vmatprep.subr.mxu0 0.0
  %1243 = vmatpush1.msra.mxu0 0.0
  %1244 = vmatprep.subr.mxu0 0.0
  %1245 = vmatpush1.msra.mxu0 0.0
  %1246 = vmatprep.subr.mxu0 0.0
  %1247 = vmatpush1.msra.mxu0 0.0
  %1248 = vmatprep.subr.mxu0 0.0
  %1249 = vmatpush1.msra.mxu0 0.0
  %1250 = vmatprep.subr.mxu0 0.0
  %1251 = vmatpush1.msra.mxu0 0.0
  %1252 = vmatprep.subr.mxu0 0.0
  %1253 = vmatpush1.msra.mxu0 0.0
  %1254 = vmatprep.subr.mxu0 0.0
  %1255 = vmatpush1.msra.mxu0 0.0
  %1256 = vmatprep.subr.mxu0 0.0
  %1257 = vmatpush1.msra.mxu0 0.0
  %1258 = vmatprep.subr.mxu0 0.0
  %1259 = vmatpush1.msra.mxu0 0.0
  %1260 = vmatprep.subr.mxu0 0.0
  %1261 = vmatpush1.msra.mxu0 0.0
  %1262 = vmatprep.subr.mxu0 0.0
  %1263 = vmatpush1.msra.mxu0 0.0
  %1264 = vmatprep.mubr.f32.mxu0 0.0
  %1265 = vmatmul.mubr.f32.gmra.mrb[0].mxu0 %v1198
  %v1266 = vpop.f32.mrb[0].mxu0
  %v1267 = vadd.f32 0.0, %v1266
  %v1268 = vpop.f32.mrb[0].mxu0
  %1269 = vdwg.mxu0
  %v1271 = vsel %vm724, %v1267, 0
  %1273 = vmatprep.subr.mxu0 0.0
  %1274 = vmatpush1.xpose.msra.mxu0 %v1198
  %1275 = vmatprep.subr.mxu0 0.0
  %1276 = vmatpush1.xpose.msra.mxu0 0.0
  %1277 = vmatprep.subr.mxu0 0.0
  %1278 = vmatpush1.xpose.msra.mxu0 0.0
  %1279 = vmatprep.subr.mxu0 0.0
  %1280 = vmatpush1.xpose.msra.mxu0 0.0
  %1281 = vmatprep.subr.mxu0 0.0
  %1282 = vmatpush1.xpose.msra.mxu0 0.0
  %1283 = vmatprep.subr.mxu0 0.0
  %1284 = vmatpush1.xpose.msra.mxu0 0.0
  %1285 = vmatprep.subr.mxu0 0.0
  %1286 = vmatpush1.xpose.msra.mxu0 0.0
  %1287 = vmatprep.subr.mxu0 0.0
  %1288 = vmatpush1.xpose.msra.mxu0 0.0
  %1289 = vmatprep.subr.mxu0 0.0
  %1290 = vmatpush1.xpose.msra.mxu0 0.0
  %1291 = vmatprep.subr.mxu0 0.0
  %1292 = vmatpush1.xpose.msra.mxu0 0.0
  %1293 = vmatprep.subr.mxu0 0.0
  %1294 = vmatpush1.xpose.msra.mxu0 0.0
  %1295 = vmatprep.subr.mxu0 0.0
  %1296 = vmatpush1.xpose.msra.mxu0 0.0
  %1297 = vmatprep.subr.mxu0 0.0
  %1298 = vmatpush1.xpose.msra.mxu0 0.0
  %1299 = vmatprep.subr.mxu0 0.0
  %1300 = vmatpush1.xpose.msra.mxu0 0.0
  %1301 = vmatprep.subr.mxu0 0.0
  %1302 = vmatpush1.xpose.msra.mxu0 0.0
  %1303 = vmatprep.subr.mxu0 0.0
  %1304 = vmatpush1.xpose.msra.mxu0 0.0
  %1305 = vmatprep.subr.mxu0 0.0
  %1306 = vmatpush1.xpose.msra.mxu0 0.0
  %1307 = vmatprep.subr.mxu0 0.0
  %1308 = vmatpush1.xpose.msra.mxu0 0.0
  %1309 = vmatprep.subr.mxu0 0.0
  %1310 = vmatpush1.xpose.msra.mxu0 0.0
  %1311 = vmatprep.subr.mxu0 0.0
  %1312 = vmatpush1.xpose.msra.mxu0 0.0
  %1313 = vmatprep.subr.mxu0 0.0
  %1314 = vmatpush1.xpose.msra.mxu0 0.0
  %1315 = vmatprep.subr.mxu0 0.0
  %1316 = vmatpush1.xpose.msra.mxu0 0.0
  %1317 = vmatprep.subr.mxu0 0.0
  %1318 = vmatpush1.xpose.msra.mxu0 0.0
  %1319 = vmatprep.subr.mxu0 0.0
  %1320 = vmatpush1.xpose.msra.mxu0 0.0
  %1321 = vmatprep.subr.mxu0 0.0
  %1322 = vmatpush1.xpose.msra.mxu0 0.0
  %1323 = vmatprep.subr.mxu0 0.0
  %1324 = vmatpush1.xpose.msra.mxu0 0.0
  %1325 = vmatprep.subr.mxu0 0.0
  %1326 = vmatpush1.xpose.msra.mxu0 0.0
  %1327 = vmatprep.subr.mxu0 0.0
  %1328 = vmatpush1.xpose.msra.mxu0 0.0
  %1329 = vmatprep.subr.mxu0 0.0
  %1330 = vmatpush1.xpose.msra.mxu0 0.0
  %1331 = vmatprep.subr.mxu0 0.0
  %1332 = vmatpush1.xpose.msra.mxu0 0.0
  %1333 = vmatprep.subr.mxu0 0.0
  %1334 = vmatpush1.xpose.msra.mxu0 0.0
  %1335 = vmatprep.subr.mxu0 0.0
  %1336 = vmatpush1.xpose.msra.mxu0 0.0
  %1337 = vmatprep.mubr.f32.mxu0 0.0
  %1338 = vmatmul.mubr.f32.gmra.mrb[0].mxu0 %v1271
  %v1339 = vpop.f32.mrb[0].mxu0
  %v1340 = vadd.f32 0.0, %v1339
  %v1341 = vpop.f32.mrb[0].mxu0
  %1342 = vdwg.mxu0
  %v1343 = vld [vmem:[%s2 + $0x30] sm:$0xff]
  %v1344 = vld [vmem:[%s2 + $0x38] sm:$0xff]
  %v1345 = vld [vmem:[%s2 + $0x40] sm:$0xff]
  %v1346 = vld [vmem:[%s2 + $0x48] sm:$0xff]
  %vm1347 = vcmask 27648
  %v1348 = vsel %vm1347, %v1340, 0.0
  %1349 = vadd.xlane.f32.xlu0 %v1348
  %v1350 = vpop.xlane.xlu0 %1349
  %vm1351 = vcmp.gt.f32.partialorder %v1350, 0.0
  %v1352 = vmax.f32 %v1350, 1e-12
  %v1353 = vrsqrt.pop %v1352
  %v1354 = vsel %vm1351, %v1353, 0.0
  %v1355 = vsub.f32 0.0, %v1354
  %v1356 = vmul.f32 %v1354, %v1194
  %v1358 = vsel %vm125, %v1340, 0
  %v1361 = vsel %vm132, %v1356, 0
  %1363 = vmatprep.subr.mxu0 0.0
  %1364 = vmatpush1.msra.mxu0 %v1361
  %1365 = vmatprep.subr.mxu0 0.0
  %1366 = vmatpush1.msra.mxu0 0.0
  %1367 = vmatprep.subr.mxu0 0.0
  %1368 = vmatpush1.msra.mxu0 0.0
  %1369 = vmatprep.subr.mxu0 0.0
  %1370 = vmatpush1.msra.mxu0 0.0
  %1371 = vmatprep.subr.mxu0 0.0
  %1372 = vmatpush1.msra.mxu0 0.0
  %1373 = vmatprep.subr.mxu0 0.0
  %1374 = vmatpush1.msra.mxu0 0.0
  %1375 = vmatprep.subr.mxu0 0.0
  %1376 = vmatpush1.msra.mxu0 0.0
  %1377 = vmatprep.subr.mxu0 0.0
  %1378 = vmatpush1.msra.mxu0 0.0
  %1379 = vmatprep.subr.mxu0 0.0
  %1380 = vmatpush1.msra.mxu0 0.0
  %1381 = vmatprep.subr.mxu0 0.0
  %1382 = vmatpush1.msra.mxu0 0.0
  %1383 = vmatprep.subr.mxu0 0.0
  %1384 = vmatpush1.msra.mxu0 0.0
  %1385 = vmatprep.subr.mxu0 0.0
  %1386 = vmatpush1.msra.mxu0 0.0
  %1387 = vmatprep.subr.mxu0 0.0
  %1388 = vmatpush1.msra.mxu0 0.0
  %1389 = vmatprep.subr.mxu0 0.0
  %1390 = vmatpush1.msra.mxu0 0.0
  %1391 = vmatprep.subr.mxu0 0.0
  %1392 = vmatpush1.msra.mxu0 0.0
  %1393 = vmatprep.subr.mxu0 0.0
  %1394 = vmatpush1.msra.mxu0 0.0
  %1395 = vmatprep.subr.mxu0 0.0
  %1396 = vmatpush1.msra.mxu0 0.0
  %1397 = vmatprep.subr.mxu0 0.0
  %1398 = vmatpush1.msra.mxu0 0.0
  %1399 = vmatprep.subr.mxu0 0.0
  %1400 = vmatpush1.msra.mxu0 0.0
  %1401 = vmatprep.subr.mxu0 0.0
  %1402 = vmatpush1.msra.mxu0 0.0
  %1403 = vmatprep.subr.mxu0 0.0
  %1404 = vmatpush1.msra.mxu0 0.0
  %1405 = vmatprep.subr.mxu0 0.0
  %1406 = vmatpush1.msra.mxu0 0.0
  %1407 = vmatprep.subr.mxu0 0.0
  %1408 = vmatpush1.msra.mxu0 0.0
  %1409 = vmatprep.subr.mxu0 0.0
  %1410 = vmatpush1.msra.mxu0 0.0
  %1411 = vmatprep.subr.mxu0 0.0
  %1412 = vmatpush1.msra.mxu0 0.0
  %1413 = vmatprep.subr.mxu0 0.0
  %1414 = vmatpush1.msra.mxu0 0.0
  %1415 = vmatprep.subr.mxu0 0.0
  %1416 = vmatpush1.msra.mxu0 0.0
  %1417 = vmatprep.subr.mxu0 0.0
  %1418 = vmatpush1.msra.mxu0 0.0
  %1419 = vmatprep.subr.mxu0 0.0
  %1420 = vmatpush1.msra.mxu0 0.0
  %1421 = vmatprep.subr.mxu0 0.0
  %1422 = vmatpush1.msra.mxu0 0.0
  %1423 = vmatprep.subr.mxu0 0.0
  %1424 = vmatpush1.msra.mxu0 0.0
  %1425 = vmatprep.subr.mxu0 0.0
  %1426 = vmatpush1.msra.mxu0 0.0
  %1427 = vmatprep.mubr.f32.mxu0 0.0
  %1428 = vmatmul.mubr.f32.gmra.mrb[0].mxu0 %v1358
  %v1429 = vpop.f32.mrb[0].mxu0
  %v1430 = vadd.f32 0.0, %v1429
  %v1431 = vpop.f32.mrb[0].mxu0
  %1432 = vdwg.mxu0
  %v1433 = vmul.f32 %v1355, %v1430
  %v1435 = vsel %vm23, %v1433, 0
  %1437 = vmatprep.subr.mxu0 0.0
  %1438 = vmatpush1.msra.mxu0 %v1345
  %1439 = vmatprep.subr.mxu0 0.0
  %1440 = vmatpush1.msra.mxu0 %v1346
  %1441 = vmatprep.subr.mxu0 0.0
  %1442 = vmatpush1.msra.mxu0 0.0
  %1443 = vmatprep.subr.mxu0 0.0
  %1444 = vmatpush1.msra.mxu0 0.0
  %1445 = vmatprep.subr.mxu0 0.0
  %1446 = vmatpush1.msra.mxu0 0.0
  %1447 = vmatprep.subr.mxu0 0.0
  %1448 = vmatpush1.msra.mxu0 0.0
  %1449 = vmatprep.subr.mxu0 0.0
  %1450 = vmatpush1.msra.mxu0 0.0
  %1451 = vmatprep.subr.mxu0 0.0
  %1452 = vmatpush1.msra.mxu0 0.0
  %1453 = vmatprep.subr.mxu0 0.0
  %1454 = vmatpush1.msra.mxu0 0.0
  %1455 = vmatprep.subr.mxu0 0.0
  %1456 = vmatpush1.msra.mxu0 0.0
  %1457 = vmatprep.subr.mxu0 0.0
  %1458 = vmatpush1.msra.mxu0 0.0
  %1459 = vmatprep.subr.mxu0 0.0
  %1460 = vmatpush1.msra.mxu0 0.0
  %1461 = vmatprep.subr.mxu0 0.0
  %1462 = vmatpush1.msra.mxu0 0.0
  %1463 = vmatprep.subr.mxu0 0.0
  %1464 = vmatpush1.msra.mxu0 0.0
  %1465 = vmatprep.subr.mxu0 0.0
  %1466 = vmatpush1.msra.mxu0 0.0
  %1467 = vmatprep.subr.mxu0 0.0
  %1468 = vmatpush1.msra.mxu0 0.0
  %1469 = vmatprep.subr.mxu0 0.0
  %1470 = vmatpush1.msra.mxu0 0.0
  %1471 = vmatprep.subr.mxu0 0.0
  %1472 = vmatpush1.msra.mxu0 0.0
  %1473 = vmatprep.subr.mxu0 0.0
  %1474 = vmatpush1.msra.mxu0 0.0
  %1475 = vmatprep.subr.mxu0 0.0
  %1476 = vmatpush1.msra.mxu0 0.0
  %1477 = vmatprep.subr.mxu0 0.0
  %1478 = vmatpush1.msra.mxu0 0.0
  %1479 = vmatprep.subr.mxu0 0.0
  %1480 = vmatpush1.msra.mxu0 0.0
  %1481 = vmatprep.subr.mxu0 0.0
  %1482 = vmatpush1.msra.mxu0 0.0
  %1483 = vmatprep.subr.mxu0 0.0
  %1484 = vmatpush1.msra.mxu0 0.0
  %1485 = vmatprep.subr.mxu0 0.0
  %1486 = vmatpush1.msra.mxu0 0.0
  %1487 = vmatprep.subr.mxu0 0.0
  %1488 = vmatpush1.msra.mxu0 0.0
  %1489 = vmatprep.subr.mxu0 0.0
  %1490 = vmatpush1.msra.mxu0 0.0
  %1491 = vmatprep.subr.mxu0 0.0
  %1492 = vmatpush1.msra.mxu0 0.0
  %1493 = vmatprep.subr.mxu0 0.0
  %1494 = vmatpush1.msra.mxu0 0.0
  %1495 = vmatprep.subr.mxu0 0.0
  %1496 = vmatpush1.msra.mxu0 0.0
  %1497 = vmatprep.subr.mxu0 0.0
  %1498 = vmatpush1.msra.mxu0 0.0
  %1499 = vmatprep.subr.mxu0 0.0
  %1500 = vmatpush1.msra.mxu0 0.0
  %1501 = vmatprep.mubr.f32.mxu0 0.0
  %1502 = vmatmul.mubr.f32.gmra.mrb[0].mxu0 %v1435
  %v1503 = vpop.f32.mrb[0].mxu0
  %v1504 = vadd.f32 0.0, %v1503
  %v1505 = vpop.f32.mrb[0].mxu0
  %1506 = vdwg.mxu0
  %v1508 = vsel %vm23, %v1194, 0
  %1510 = vmatprep.subr.mxu0 0.0
  %1511 = vmatpush1.msra.mxu0 %v1343
  %1512 = vmatprep.subr.mxu0 0.0
  %1513 = vmatpush1.msra.mxu0 %v1344
  %1514 = vmatprep.subr.mxu0 0.0
  %1515 = vmatpush1.msra.mxu0 0.0
  %1516 = vmatprep.subr.mxu0 0.0
  %1517 = vmatpush1.msra.mxu0 0.0
  %1518 = vmatprep.subr.mxu0 0.0
  %1519 = vmatpush1.msra.mxu0 0.0
  %1520 = vmatprep.subr.mxu0 0.0
  %1521 = vmatpush1.msra.mxu0 0.0
  %1522 = vmatprep.subr.mxu0 0.0
  %1523 = vmatpush1.msra.mxu0 0.0
  %1524 = vmatprep.subr.mxu0 0.0
  %1525 = vmatpush1.msra.mxu0 0.0
  %1526 = vmatprep.subr.mxu0 0.0
  %1527 = vmatpush1.msra.mxu0 0.0
  %1528 = vmatprep.subr.mxu0 0.0
  %1529 = vmatpush1.msra.mxu0 0.0
  %1530 = vmatprep.subr.mxu0 0.0
  %1531 = vmatpush1.msra.mxu0 0.0
  %1532 = vmatprep.subr.mxu0 0.0
  %1533 = vmatpush1.msra.mxu0 0.0
  %1534 = vmatprep.subr.mxu0 0.0
  %1535 = vmatpush1.msra.mxu0 0.0
  %1536 = vmatprep.subr.mxu0 0.0
  %1537 = vmatpush1.msra.mxu0 0.0
  %1538 = vmatprep.subr.mxu0 0.0
  %1539 = vmatpush1.msra.mxu0 0.0
  %1540 = vmatprep.subr.mxu0 0.0
  %1541 = vmatpush1.msra.mxu0 0.0
  %1542 = vmatprep.subr.mxu0 0.0
  %1543 = vmatpush1.msra.mxu0 0.0
  %1544 = vmatprep.subr.mxu0 0.0
  %1545 = vmatpush1.msra.mxu0 0.0
  %1546 = vmatprep.subr.mxu0 0.0
  %1547 = vmatpush1.msra.mxu0 0.0
  %1548 = vmatprep.subr.mxu0 0.0
  %1549 = vmatpush1.msra.mxu0 0.0
  %1550 = vmatprep.subr.mxu0 0.0
  %1551 = vmatpush1.msra.mxu0 0.0
  %1552 = vmatprep.subr.mxu0 0.0
  %1553 = vmatpush1.msra.mxu0 0.0
  %1554 = vmatprep.subr.mxu0 0.0
  %1555 = vmatpush1.msra.mxu0 0.0
  %1556 = vmatprep.subr.mxu0 0.0
  %1557 = vmatpush1.msra.mxu0 0.0
  %1558 = vmatprep.subr.mxu0 0.0
  %1559 = vmatpush1.msra.mxu0 0.0
  %1560 = vmatprep.subr.mxu0 0.0
  %1561 = vmatpush1.msra.mxu0 0.0
  %1562 = vmatprep.subr.mxu0 0.0
  %1563 = vmatpush1.msra.mxu0 0.0
  %1564 = vmatprep.subr.mxu0 0.0
  %1565 = vmatpush1.msra.mxu0 0.0
  %1566 = vmatprep.subr.mxu0 0.0
  %1567 = vmatpush1.msra.mxu0 0.0
  %1568 = vmatprep.subr.mxu0 0.0
  %1569 = vmatpush1.msra.mxu0 0.0
  %1570 = vmatprep.subr.mxu0 0.0
  %1571 = vmatpush1.msra.mxu0 0.0
  %1572 = vmatprep.subr.mxu0 0.0
  %1573 = vmatpush1.msra.mxu0 0.0
  %1574 = vmatprep.mubr.f32.mxu0 0.0
  %1575 = vmatmul.mubr.f32.gmra.mrb[0].mxu0 %v1508
  %v1576 = vpop.f32.mrb[0].mxu0
  %v1577 = vadd.f32 %v1504, %v1576
  %v1578 = vpop.f32.mrb[0].mxu0
  %1579 = vdwg.mxu0
  %v1580 = vlaneseq
  %v1581 = vshrl.u32 %v1580, 7
  %v1582 = vsub.s32 0, %v1581
  %v1583 = vrot.slane %v18, %v1582
  %v1584 = vadd.f32 %v1577, %v1583
  %vm1585 = vcmask 125952
  %v1586 = vsel %vm1585, %v1584, 0.0
  %v1587 = vrot.slane %v1586, 4
  %v1588 = vadd.f32 %v1586, %v1587
  %v1589 = vrot.slane %v1588, 2
  %v1590 = vadd.f32 %v1588, %v1589
  %v1591 = vrot.slane %v1590, 1
  %v1592 = vadd.f32 %v1590, %v1591
  %v1593 = vmul.f32 %v1592, 0.25
  %v1594 = vmul.f32 %v1593, %v18
  %v1595 = vlaneseq
  %v1596 = vshrl.u32 %v1595, 7
  %v1597 = vsub.s32 3, %v1596
  %v1598 = vrot.slane %v1594, %v1597
  %v1599 = vsub.f32 %v1584, %v1598
  %v1600 = vmul.f32 %v1599, %v1599
  %v1601 = vsel %vm1585, %v1600, 0.0
  %v1602 = vrot.slane %v1601, 4
  %v1603 = vadd.f32 %v1601, %v1602
  %v1604 = vrot.slane %v1603, 2
  %v1605 = vadd.f32 %v1603, %v1604
  %v1606 = vrot.slane %v1605, 1
  %v1607 = vadd.f32 %v1605, %v1606
  %v1608 = vmul.f32 %v1607, 0.25
  %v1609 = vadd.f32 %v1608, 1e-05
  %v1610 = vrsqrt.pop %v1609
  %v1611 = vmul.f32 %v1599, %v1610
  %v1612 = vlaneseq
  %v1613 = vshrl.u32 %v1612, 7
  %v1614 = vsub.s32 1, %v1613
  %v1615 = vrot.slane %v18, %v1614
  %v1616 = vmul.f32 %v1611, %v1615
  %v1617 = vlaneseq
  %v1618 = vshrl.u32 %v1617, 7
  %v1619 = vsub.s32 2, %v1618
  %v1620 = vrot.slane %v18, %v1619
  %v1621 = vadd.f32 %v1616, %v1620
  %v1622 = vmax.f32 %v1621, 0.0
  %1623 = vst.msk [vmem:[%s3 + $0x18] sm:$0xf] %vm1585, %v1622
  // Predicated region
  $region14: #{chebnet_forward.1} parent=0 // pred_check
    _
  $region15: #{chebnet_forward.1} parent=0 // pred_check_branch
    %1625 = sbr.rel (0) target = $region17
  $region16: #{chebnet_forward.1} parent=0 // pred_region
    _
  $region17: #{chebnet_forward.1} parent=0 // pred_fallthru
    _
  // Predicated region
  $region18: #{chebnet_forward.1} parent=0 // pred_check
    _
  $region19: #{chebnet_forward.1} parent=0 // pred_check_branch
    %1627 = sbr.rel (0) target = $region21
  $region20: #{chebnet_forward.1} parent=0 // pred_region
    _
  $region21: #{chebnet_forward.1} parent=0 // pred_fallthru
    _

</llo_original>
